<compile_context>
chip_gen: v7x
topology: tpu7x:2x2x1
jax: 0.10.0
libtpu: 0.0.40
codegen_flags: <defaults>
</compile_context>

<pallas_src>
import functools
import math

import jax
import jax.numpy as jnp
from jax.experimental import pallas as pl
from jax.experimental.pallas import tpu as pltpu


CFG = dict(B=2, S=8, H=32, nH=2, Dh=16, I=64, L=2,
           vocab=50, max_pos=16, h_dim=16, op_dim=4)
LN_EPS = 1e-12

# Row indices inside the packed per-layer "small parameter" slab.
_ROW_BO, _ROW_LN1G, _ROW_LN1B, _ROW_B1, _ROW_B2, _ROW_LN2G, _ROW_LN2B = range(7)
_N_SMALL = 7


# ----------------------------------------------------------------------------
# In-kernel math helpers (operate on values, not refs)
# ----------------------------------------------------------------------------

def _bf16(x):
    return x.astype(jnp.bfloat16)


def _layernorm(x, g, b, eps=LN_EPS):
    """LayerNorm over the last axis; x:[S,H] f32, g/b:[1,H] f32."""
    mu = jnp.mean(x, axis=-1, keepdims=True)
    var = jnp.mean(jnp.square(x - mu), axis=-1, keepdims=True)
    return (x - mu) * jax.lax.rsqrt(var + eps) * g + b


def _gelu_tanh(x):
    """tanh-form GELU (one EUP tanh + a few VALU ops, per perf review).

    Differs from the exact erf form by <~1e-3, below the bf16-matmul noise of
    this mixed-precision kernel.
    """
    return 0.5 * x * (1.0 + jnp.tanh(0.7978845608028654
                                     * (x + 0.044715 * x * x * x)))


# ----------------------------------------------------------------------------
# Fused encoder + classifier kernel.  One grid step = (batch tile, layer).
# ----------------------------------------------------------------------------

def _bert_kernel(x_ref, mask_ref, embg_ref, embb_ref,
                 wqkv_ref, bqkv_ref, wo_ref, w1_ref, w2_ref, small_ref,
                 wc1_ref, bc1_ref, wc2_ref, bc2_ref,
                 o_ref, h_scr, *, S, H, nH, Dh, I, scale):
    layer = pl.program_id(1)

    # Layer 0 of each batch tile: seed the resident residual stream with the
    # embedding LayerNorm (x_ref is only a [1, S, H] per-tile block, so it is
    # not held for the whole grid — addresses the VMEM concern directly).
    @pl.when(layer == 0)
    def _():
        h_scr[...] = _layernorm(x_ref[0], embg_ref[...], embb_ref[...])

    x = h_scr[...]                                     # [S, H] f32 residual
    small = small_ref[0]                               # [7, PW] f32 packed

    bo = small[_ROW_BO:_ROW_BO + 1, :H]
    ln1_g = small[_ROW_LN1G:_ROW_LN1G + 1, :H]
    ln1_b = small[_ROW_LN1B:_ROW_LN1B + 1, :H]
    b1 = small[_ROW_B1:_ROW_B1 + 1, :I]
    b2 = small[_ROW_B2:_ROW_B2 + 1, :H]
    ln2_g = small[_ROW_LN2G:_ROW_LN2G + 1, :H]
    ln2_b = small[_ROW_LN2B:_ROW_LN2B + 1, :H]

    # ---- attention: fully batched over heads (no loops / concats) -----------
    xb = _bf16(x)
    x3 = jnp.broadcast_to(xb, (3 * nH, S, H))          # tiny at this config
    # One batched contraction produces Q/K/V already head-batched: [3nH, S, Dh]
    qkv = jnp.einsum('gsk,gkd->gsd', x3, wqkv_ref[0],
                     preferred_element_type=jnp.float32) + bqkv_ref[0]
    q = qkv[:nH]                                       # leading-axis slices
    k = qkv[nH:2 * nH]                                 # (no lane relayouts)
    v = qkv[2 * nH:]

    s = jnp.einsum('hqd,hkd->hqk', _bf16(q), _bf16(k),
                   preferred_element_type=jnp.float32)     # [nH, S, S]
    s = s * scale + mask_ref[0]                            # mask: [1, S] (keys)
    s = s - jnp.max(s, axis=-1, keepdims=True)
    e = jnp.exp(s)
    p = e * pl.reciprocal(jnp.sum(e, axis=-1, keepdims=True), approx=True)
    # head_mask is all-ones (HF semantics) -> multiply folded away.
    ctx = jnp.einsum('hqk,hkd->hqd', _bf16(p), _bf16(v),
                     preferred_element_type=jnp.float32)   # [nH, S, Dh]

    # Output projection as a batched per-head matmul + leading-axis sum: avoids
    # re-merging heads onto the lane axis (no concat / relayout).
    attn = jnp.einsum('hsd,hdo->hso', _bf16(ctx), wo_ref[0],
                      preferred_element_type=jnp.float32)  # [nH, S, H]
    attn = jnp.sum(attn, axis=0) + bo                      # [S, H]
    x1 = _layernorm(attn + x, ln1_g, ln1_b)

    # ---- fused FFN: w1 -> gelu -> w2, + residual + LayerNorm -----------------
    ff = jnp.dot(_bf16(x1), w1_ref[0], preferred_element_type=jnp.float32) + b1
    ff = _gelu_tanh(ff)
    ff = jnp.dot(_bf16(ff), w2_ref[0], preferred_element_type=jnp.float32) + b2
    x2 = _layernorm(ff + x1, ln2_g, ln2_b)
    h_scr[...] = x2

    # ---- fused classifier head on the CLS row at the last layer --------------
    @pl.when(layer == pl.num_programs(1) - 1)
    def _():
        cls = x2[0:1, :]                                   # CLS token, [1, H]
        hid = jnp.dot(_bf16(cls), wc1_ref[...],
                      preferred_element_type=jnp.float32) + bc1_ref[...]
        hid = jnp.maximum(hid, 0.0)
        logits = jnp.dot(_bf16(hid), wc2_ref[...],
                         preferred_element_type=jnp.float32) + bc2_ref[...]
        o_ref[0] = logits.astype(o_ref.dtype)              # [1, op_dim]


# ----------------------------------------------------------------------------
# pallas_call wrapper
# ----------------------------------------------------------------------------

def bert_classifier_forward(params, ids, mask):
    c = CFG
    B, S, H, nH, Dh, I, L = (c["B"], c["S"], c["H"], c["nH"],
                             c["Dh"], c["I"], c["L"])
    G3 = 3 * nH
    PW = max(H, I)
    scale = 1.0 / math.sqrt(Dh)

    # --- embeddings (gather + sum is plain-JAX glue) --------------------------
    emb = (params["word_emb"][ids]
           + params["pos_emb"][:S][None, :, :]
           + params["type_emb"][0][None, None, :])         # [B, S, H] f32
    # extended attention mask (HF): (1 - mask) * -1e9, added to scores
    add_mask = ((1.0 - mask.astype(jnp.float32)) * -1e9).reshape(B, 1, S)

    def fixed(shape):                 # same block every grid step (fetched once)
        return pl.BlockSpec(shape, lambda b, l: (0,) * len(shape))

    def per_batch(shape):             # one [1, ...] slab per batch tile
        return pl.BlockSpec((1,) + shape, lambda b, l: (b,) + (0,) * len(shape))

    def per_layer(shape):             # one [1, ...] slab of a stacked weight
        return pl.BlockSpec((1,) + shape, lambda b, l: (l,) + (0,) * len(shape))

    grid_spec = pltpu.PrefetchScalarGridSpec(
        num_scalar_prefetch=0,
        grid=(B, L),                                   # (batch tile, layer)
        in_specs=[
            per_batch((S, H)),                         # pre-LN embeddings
            per_batch((1, S)),                         # additive attention mask
            fixed((1, H)), fixed((1, H)),              # embedding LN gamma/beta
            per_layer((G3, H, Dh)),                    # head-batched QKV weight
            per_layer((G3, 1, Dh)),                    # head-batched QKV bias
            per_layer((nH, Dh, H)),                    # per-head output proj
            per_layer((H, I)),                         # FFN w1
            per_layer((I, H)),                         # FFN w2
            per_layer((_N_SMALL, PW)),                 # packed small params
            fixed((H, c["h_dim"])), fixed((1, c["h_dim"])),      # classifier 1
            fixed((c["h_dim"], c["op_dim"])), fixed((1, c["op_dim"])),  # clf 2
        ],
        out_specs=pl.BlockSpec((1, 1, c["op_dim"]), lambda b, l: (b, 0, 0)),
        scratch_shapes=[pltpu.VMEM((S, H), jnp.float32)],   # resident residual
    )
    kernel = functools.partial(_bert_kernel, S=S, H=H, nH=nH, Dh=Dh, I=I,
                               scale=scale)
    out = pl.pallas_call(
        kernel,
        out_shape=jax.ShapeDtypeStruct((B, 1, c["op_dim"]), jnp.float32),
        grid_spec=grid_spec,
        compiler_params=pltpu.CompilerParams(
            # batch tiles shard across v7x's two TensorCores; layers sequential
            dimension_semantics=("parallel", "arbitrary")),
    )(emb, add_mask, params["emb_ln_g"], params["emb_ln_b"],
      params["wqkv"], params["bqkv"], params["wo"],
      params["w1"], params["w2"], params["small"],
      params["wc1"], params["bc1"], params["wc2"], params["bc2"])
    return out[:, 0, :]                                     # [B, op_dim]


# ----------------------------------------------------------------------------
# Parameters: standard BERT-layer layout, repacked (outside the kernel) into
# the head-batched / packed layouts the kernel consumes.
# ----------------------------------------------------------------------------

def init_params(key):
    c = CFG
    H, I, L, nH, Dh = c["H"], c["I"], c["L"], c["nH"], c["Dh"]
    PW = max(H, I)
    ks = iter(jax.random.split(key, 24))

    def nrm(shape, scl=0.02):
        return scl * jax.random.normal(next(ks), shape, jnp.float32)

    # embedding tables stay f32 (gather operands, not MXU operands)
    word_emb = nrm((c["vocab"], H))
    pos_emb = nrm((c["max_pos"], H))
    type_emb = nrm((2, H))

    # --- per-layer weights in standard layout (y = x @ W + b) -----------------
    wq, wk, wv = nrm((L, H, H)), nrm((L, H, H)), nrm((L, H, H))
    bq, bk, bv = nrm((L, H)), nrm((L, H)), nrm((L, H))
    wo, bo = nrm((L, H, H)), nrm((L, H))
    w1, b1 = nrm((L, H, I)), nrm((L, I))
    w2, b2 = nrm((L, I, H)), nrm((L, H))
    ln1_g = jnp.ones((L, H), jnp.float32)
    ln1_b = jnp.zeros((L, H), jnp.float32)
    ln2_g = jnp.ones((L, H), jnp.float32)
    ln2_b = jnp.zeros((L, H), jnp.float32)
    wc1, bc1 = nrm((H, c["h_dim"])), nrm((1, c["h_dim"]))
    wc2, bc2 = nrm((c["h_dim"], c["op_dim"])), nrm((1, c["op_dim"]))

    # --- repack for the kernel (free, plain JAX at init) -----------------------
    def heads_cols(w):        # [L, H, H] -> [L, nH, H, Dh]: output cols by head
        return w.reshape(L, H, nH, Dh).transpose(0, 2, 1, 3)

    wqkv = jnp.concatenate([heads_cols(wq), heads_cols(wk), heads_cols(wv)],
                           axis=1)                           # [L, 3nH, H, Dh]
    bqkv = jnp.concatenate([bq.reshape(L, nH, 1, Dh),
                            bk.reshape(L, nH, 1, Dh),
                            bv.reshape(L, nH, 1, Dh)], axis=1)  # [L, 3nH, 1, Dh]
    wo_h = wo.reshape(L, nH, Dh, H)           # Wo input rows grouped by head

    small = jnp.zeros((L, _N_SMALL, PW), jnp.float32)
    for r, vec in ((_ROW_BO, bo), (_ROW_LN1G, ln1_g), (_ROW_LN1B, ln1_b),
                   (_ROW_B1, b1), (_ROW_B2, b2), (_ROW_LN2G, ln2_g),
                   (_ROW_LN2B, ln2_b)):
        small = small.at[:, r, :vec.shape[-1]].set(vec)

    bf = lambda a: a.astype(jnp.bfloat16)    # matmul operands bf16, rest f32
    return dict(
        word_emb=word_emb, pos_emb=pos_emb, type_emb=type_emb,
        emb_ln_g=jnp.ones((1, H), jnp.float32),
        emb_ln_b=jnp.zeros((1, H), jnp.float32),
        wqkv=bf(wqkv), bqkv=bqkv, wo=bf(wo_h),
        w1=bf(w1), w2=bf(w2), small=small,
        wc1=bf(wc1), bc1=bc1, wc2=bf(wc2), bc2=bc2,
    )


# ----------------------------------------------------------------------------
if __name__ == "__main__":
    key = jax.random.PRNGKey(0)
    pkey, ikey = jax.random.split(key)

    params = init_params(pkey)

    B, S = CFG["B"], CFG["S"]
    ids = jax.random.randint(ikey, (B, S), 0, CFG["vocab"], dtype=jnp.int32)
    # attention mask: second sequence has the last 3 positions padded out
    mask = jnp.ones((B, S), jnp.int32).at[1, -3:].set(0)

    out = jax.jit(bert_classifier_forward)(params, ids, mask)
    out = jax.block_until_ready(out)

    assert out.shape == (B, CFG["op_dim"]), out.shape
    assert jnp.all(jnp.isfinite(out))
    print("KERNEL_OK")
</pallas_src>

<mosaic_0001>
module attributes {stable_mosaic.version = 11 : i64} {
  func.func @_bert_kernel(%arg0: i32, %arg1: i32, %arg2: memref<1x8x32xf32, #tpu.memory_space<vmem>>, %arg3: memref<1x1x8xf32, #tpu.memory_space<vmem>>, %arg4: memref<1x32xf32, #tpu.memory_space<vmem>>, %arg5: memref<1x32xf32, #tpu.memory_space<vmem>>, %arg6: memref<1x6x32x16xbf16, #tpu.memory_space<vmem>>, %arg7: memref<1x6x1x16xf32, #tpu.memory_space<vmem>>, %arg8: memref<1x2x16x32xbf16, #tpu.memory_space<vmem>>, %arg9: memref<1x32x64xbf16, #tpu.memory_space<vmem>>, %arg10: memref<1x64x32xbf16, #tpu.memory_space<vmem>>, %arg11: memref<1x7x64xf32, #tpu.memory_space<vmem>>, %arg12: memref<32x16xbf16, #tpu.memory_space<vmem>>, %arg13: memref<1x16xf32, #tpu.memory_space<vmem>>, %arg14: memref<16x4xbf16, #tpu.memory_space<vmem>>, %arg15: memref<1x4xf32, #tpu.memory_space<vmem>>, %arg16: memref<1x1x4xf32, #tpu.memory_space<vmem>>, %arg17: memref<8x32xf32, #tpu.memory_space<vmem>>) attributes {dimension_semantics = [#tpu.dimension_semantics<parallel>, #tpu.dimension_semantics<arbitrary>], iteration_bounds = array<i64: 2, 2>, scalar_prefetch = 0 : i64, scratch_operands = 1 : i64, tpu.core_type = #tpu.core_type<tc>, window_params = [{transform_indices = @transform_0, window_bounds = array<i64: 1, 8, 32>}, {transform_indices = @transform_1, window_bounds = array<i64: 1, 1, 8>}, {pipeline_mode = #tpu.pipeline_mode<synchronous>, transform_indices = @transform_2, window_bounds = array<i64: 1, 32>}, {pipeline_mode = #tpu.pipeline_mode<synchronous>, transform_indices = @transform_3, window_bounds = array<i64: 1, 32>}, {transform_indices = @transform_4, window_bounds = array<i64: 1, 6, 32, 16>}, {transform_indices = @transform_5, window_bounds = array<i64: 1, 6, 1, 16>}, {transform_indices = @transform_6, window_bounds = array<i64: 1, 2, 16, 32>}, {transform_indices = @transform_7, window_bounds = array<i64: 1, 32, 64>}, {transform_indices = @transform_8, window_bounds = array<i64: 1, 64, 32>}, {transform_indices = @transform_9, window_bounds = array<i64: 1, 7, 64>}, {pipeline_mode = #tpu.pipeline_mode<synchronous>, transform_indices = @transform_10, window_bounds = array<i64: 32, 16>}, {pipeline_mode = #tpu.pipeline_mode<synchronous>, transform_indices = @transform_11, window_bounds = array<i64: 1, 16>}, {pipeline_mode = #tpu.pipeline_mode<synchronous>, transform_indices = @transform_12, window_bounds = array<i64: 16, 4>}, {pipeline_mode = #tpu.pipeline_mode<synchronous>, transform_indices = @transform_13, window_bounds = array<i64: 1, 4>}, {transform_indices = @transform_14, window_bounds = array<i64: 1, 1, 4>}]} {
    %c0_i32 = arith.constant 0 : i32
    %0 = arith.cmpi eq, %arg1, %c0_i32 : i32
    %1 = arith.extui %0 : i1 to i32
    %c0_i32_0 = arith.constant 0 : i32
    %2 = arith.cmpi ne, %1, %c0_i32_0 : i32
    scf.if %2 {
      %c0_52 = arith.constant 0 : index
      %c0_53 = arith.constant 0 : index
      %c0_54 = arith.constant 0 : index
      %131 = vector.load %arg2[%c0_52, %c0_53, %c0_54] : memref<1x8x32xf32, #tpu.memory_space<vmem>>, vector<1x8x32xf32>
      %132 = vector.shape_cast %131 : vector<1x8x32xf32> to vector<8x32xf32>
      %c0_55 = arith.constant 0 : index
      %c0_56 = arith.constant 0 : index
      %133 = vector.load %arg4[%c0_55, %c0_56] : memref<1x32xf32, #tpu.memory_space<vmem>>, vector<1x32xf32>
      %c0_57 = arith.constant 0 : index
      %c0_58 = arith.constant 0 : index
      %134 = vector.load %arg5[%c0_57, %c0_58] : memref<1x32xf32, #tpu.memory_space<vmem>>, vector<1x32xf32>
      %cst_59 = arith.constant dense<0.000000e+00> : vector<8xf32>
      %135 = vector.multi_reduction <add>, %132, %cst_59 [1] : vector<8x32xf32> to vector<8xf32>
      %136 = vector.shape_cast %135 : vector<8xf32> to vector<8x1xf32>
      %cst_60 = arith.constant 3.200000e+01 : f32
      %137 = vector.broadcast %cst_60 : f32 to vector<8x1xf32>
      %138 = arith.divf %136, %137 : vector<8x1xf32>
      %139 = vector.broadcast %138 : vector<8x1xf32> to vector<8x32xf32>
      %140 = arith.subf %132, %139 : vector<8x32xf32>
      %141 = arith.mulf %140, %140 : vector<8x32xf32>
      %cst_61 = arith.constant dense<0.000000e+00> : vector<8xf32>
      %142 = vector.multi_reduction <add>, %141, %cst_61 [1] : vector<8x32xf32> to vector<8xf32>
      %143 = vector.shape_cast %142 : vector<8xf32> to vector<8x1xf32>
      %cst_62 = arith.constant 3.200000e+01 : f32
      %144 = vector.broadcast %cst_62 : f32 to vector<8x1xf32>
      %145 = arith.divf %143, %144 : vector<8x1xf32>
      %146 = vector.broadcast %138 : vector<8x1xf32> to vector<8x32xf32>
      %147 = arith.subf %132, %146 : vector<8x32xf32>
      %cst_63 = arith.constant 9.99999996E-13 : f32
      %148 = vector.broadcast %cst_63 : f32 to vector<8x1xf32>
      %149 = arith.addf %145, %148 : vector<8x1xf32>
      %150 = math.rsqrt %149 : vector<8x1xf32>
      %151 = vector.broadcast %150 : vector<8x1xf32> to vector<8x32xf32>
      %152 = arith.mulf %147, %151 : vector<8x32xf32>
      %153 = vector.broadcast %133 : vector<1x32xf32> to vector<8x32xf32>
      %154 = arith.mulf %152, %153 : vector<8x32xf32>
      %155 = vector.broadcast %134 : vector<1x32xf32> to vector<8x32xf32>
      %156 = arith.addf %154, %155 : vector<8x32xf32>
      %c0_64 = arith.constant 0 : index
      %c0_65 = arith.constant 0 : index
      %157 = vector.load %arg17[%c0_64, %c0_65] : memref<8x32xf32, #tpu.memory_space<vmem>>, vector<8x32xf32>
      tpu.vector_store %arg17[%c0_64, %c0_65], %156 {strides = array<i32>} : memref<8x32xf32, #tpu.memory_space<vmem>>, vector<8x32xf32>,
    } else {
    }
    %c0 = arith.constant 0 : index
    %c0_1 = arith.constant 0 : index
    %3 = vector.load %arg17[%c0, %c0_1] : memref<8x32xf32, #tpu.memory_space<vmem>>, vector<8x32xf32>
    %c0_2 = arith.constant 0 : index
    %c0_3 = arith.constant 0 : index
    %c0_4 = arith.constant 0 : index
    %4 = vector.load %arg11[%c0_2, %c0_3, %c0_4] : memref<1x7x64xf32, #tpu.memory_space<vmem>>, vector<1x7x64xf32>
    %5 = vector.shape_cast %4 : vector<1x7x64xf32> to vector<7x64xf32>
    %6 = vector.extract_strided_slice %5 {offsets = [0, 0], sizes = [1, 32], strides = [1, 1]} : vector<7x64xf32> to vector<1x32xf32>
    %7 = vector.extract_strided_slice %5 {offsets = [1, 0], sizes = [1, 32], strides = [1, 1]} : vector<7x64xf32> to vector<1x32xf32>
    %8 = vector.extract_strided_slice %5 {offsets = [2, 0], sizes = [1, 32], strides = [1, 1]} : vector<7x64xf32> to vector<1x32xf32>
    %9 = vector.extract_strided_slice %5 {offsets = [3, 0], sizes = [1, 64], strides = [1, 1]} : vector<7x64xf32> to vector<1x64xf32>
    %10 = vector.extract_strided_slice %5 {offsets = [4, 0], sizes = [1, 32], strides = [1, 1]} : vector<7x64xf32> to vector<1x32xf32>
    %11 = vector.extract_strided_slice %5 {offsets = [5, 0], sizes = [1, 32], strides = [1, 1]} : vector<7x64xf32> to vector<1x32xf32>
    %12 = vector.extract_strided_slice %5 {offsets = [6, 0], sizes = [1, 32], strides = [1, 1]} : vector<7x64xf32> to vector<1x32xf32>
    %13 = arith.truncf %3 : vector<8x32xf32> to vector<8x32xbf16>
    %14 = vector.shape_cast %13 : vector<8x32xbf16> to vector<1x8x32xbf16>
    %15 = vector.broadcast %14 : vector<1x8x32xbf16> to vector<6x8x32xbf16>
    %c0_5 = arith.constant 0 : index
    %c0_6 = arith.constant 0 : index
    %c0_7 = arith.constant 0 : index
    %c0_8 = arith.constant 0 : index
    %16 = vector.load %arg6[%c0_5, %c0_6, %c0_7, %c0_8] : memref<1x6x32x16xbf16, #tpu.memory_space<vmem>>, vector<1x6x32x16xbf16>
    %17 = vector.shape_cast %16 : vector<1x6x32x16xbf16> to vector<6x32x16xbf16>
    "tpu.trace_start"() <{level = 10 : i32, message = "gsk,gkd->gsd"}> : () -> ()
    %cst = arith.constant dense<0.000000e+00> : vector<6x8x16xf32>
    %18 = tpu.matmul %15, %17, %cst {dimension_numbers = #tpu.dot_dimension_numbers<[2], [1], [1], [2], [0, 0, 0, 1, 1, 2], [0], [0]>} : vector<6x8x32xbf16>, vector<6x32x16xbf16>, vector<6x8x16xf32> -> vector<6x8x16xf32>
    "tpu.trace_stop"() : () -> ()
    %c0_9 = arith.constant 0 : index
    %c0_10 = arith.constant 0 : index
    %c0_11 = arith.constant 0 : index
    %c0_12 = arith.constant 0 : index
    %19 = vector.load %arg7[%c0_9, %c0_10, %c0_11, %c0_12] : memref<1x6x1x16xf32, #tpu.memory_space<vmem>>, vector<1x6x1x16xf32>
    %20 = vector.shape_cast %19 : vector<1x6x1x16xf32> to vector<6x1x16xf32>
    %21 = vector.broadcast %20 : vector<6x1x16xf32> to vector<6x8x16xf32>
    %22 = arith.addf %18, %21 : vector<6x8x16xf32>
    %23 = vector.extract_strided_slice %22 {offsets = [0, 0, 0], sizes = [2, 8, 16], strides = [1, 1, 1]} : vector<6x8x16xf32> to vector<2x8x16xf32>
    %24 = vector.extract_strided_slice %22 {offsets = [2, 0, 0], sizes = [2, 8, 16], strides = [1, 1, 1]} : vector<6x8x16xf32> to vector<2x8x16xf32>
    %25 = vector.extract_strided_slice %22 {offsets = [4, 0, 0], sizes = [2, 8, 16], strides = [1, 1, 1]} : vector<6x8x16xf32> to vector<2x8x16xf32>
    %26 = arith.truncf %23 : vector<2x8x16xf32> to vector<2x8x16xbf16>
    %27 = arith.truncf %24 : vector<2x8x16xf32> to vector<2x8x16xbf16>
    "tpu.trace_start"() <{level = 10 : i32, message = "hqd,hkd->hqk"}> : () -> ()
    %cst_13 = arith.constant dense<0.000000e+00> : vector<2x8x8xf32>
    %28 = tpu.matmul %26, %27, %cst_13 {dimension_numbers = #tpu.dot_dimension_numbers<[2], [2], [1], [1], [0, 0, 0, 1, 1, 1], [0], [0]>} : vector<2x8x16xbf16>, vector<2x8x16xbf16>, vector<2x8x8xf32> -> vector<2x8x8xf32>
    "tpu.trace_stop"() : () -> ()
    %cst_14 = arith.constant 2.500000e-01 : f32
    %29 = vector.broadcast %cst_14 : f32 to vector<2x8x8xf32>
    %30 = arith.mulf %28, %29 : vector<2x8x8xf32>
    %c0_15 = arith.constant 0 : index
    %c0_16 = arith.constant 0 : index
    %c0_17 = arith.constant 0 : index
    %31 = vector.load %arg3[%c0_15, %c0_16, %c0_17] : memref<1x1x8xf32, #tpu.memory_space<vmem>>, vector<1x1x8xf32>
    %32 = vector.shape_cast %31 : vector<1x1x8xf32> to vector<1x8xf32>
    %33 = vector.shape_cast %32 : vector<1x8xf32> to vector<1x1x8xf32>
    %34 = vector.broadcast %33 : vector<1x1x8xf32> to vector<2x8x8xf32>
    %35 = arith.addf %30, %34 : vector<2x8x8xf32>
    %cst_18 = arith.constant dense<0xFF800000> : vector<2x8xf32>
    %36 = vector.multi_reduction <maximumf>, %35, %cst_18 [2] : vector<2x8x8xf32> to vector<2x8xf32>
    %37 = vector.shape_cast %36 : vector<2x8xf32> to vector<2x8x1xf32>
    %38 = vector.broadcast %37 : vector<2x8x1xf32> to vector<2x8x8xf32>
    %39 = arith.subf %35, %38 : vector<2x8x8xf32>
    %40 = math.exp %39 : vector<2x8x8xf32>
    %cst_19 = arith.constant dense<0.000000e+00> : vector<2x8xf32>
    %41 = vector.multi_reduction <add>, %40, %cst_19 [2] : vector<2x8x8xf32> to vector<2x8xf32>
    %42 = vector.shape_cast %41 : vector<2x8xf32> to vector<2x8x1xf32>
    %43 = tpu.reciprocal %42 {approx = true} : vector<2x8x1xf32> -> vector<2x8x1xf32>
    %44 = vector.broadcast %43 : vector<2x8x1xf32> to vector<2x8x8xf32>
    %45 = arith.mulf %40, %44 : vector<2x8x8xf32>
    %46 = arith.truncf %45 : vector<2x8x8xf32> to vector<2x8x8xbf16>
    %47 = arith.truncf %25 : vector<2x8x16xf32> to vector<2x8x16xbf16>
    "tpu.trace_start"() <{level = 10 : i32, message = "hqk,hkd->hqd"}> : () -> ()
    %cst_20 = arith.constant dense<0.000000e+00> : vector<2x8x16xf32>
    %48 = tpu.matmul %46, %47, %cst_20 {dimension_numbers = #tpu.dot_dimension_numbers<[2], [1], [1], [2], [0, 0, 0, 1, 1, 2], [0], [0]>} : vector<2x8x8xbf16>, vector<2x8x16xbf16>, vector<2x8x16xf32> -> vector<2x8x16xf32>
    "tpu.trace_stop"() : () -> ()
    %49 = arith.truncf %48 : vector<2x8x16xf32> to vector<2x8x16xbf16>
    %c0_21 = arith.constant 0 : index
    %c0_22 = arith.constant 0 : index
    %c0_23 = arith.constant 0 : index
    %c0_24 = arith.constant 0 : index
    %50 = vector.load %arg8[%c0_21, %c0_22, %c0_23, %c0_24] : memref<1x2x16x32xbf16, #tpu.memory_space<vmem>>, vector<1x2x16x32xbf16>
    %51 = vector.shape_cast %50 : vector<1x2x16x32xbf16> to vector<2x16x32xbf16>
    "tpu.trace_start"() <{level = 10 : i32, message = "hsd,hdo->hso"}> : () -> ()
    %cst_25 = arith.constant dense<0.000000e+00> : vector<2x8x32xf32>
    %52 = tpu.matmul %49, %51, %cst_25 {dimension_numbers = #tpu.dot_dimension_numbers<[2], [1], [1], [2], [0, 0, 0, 1, 1, 2], [0], [0]>} : vector<2x8x16xbf16>, vector<2x16x32xbf16>, vector<2x8x32xf32> -> vector<2x8x32xf32>
    "tpu.trace_stop"() : () -> ()
    %cst_26 = arith.constant dense<0.000000e+00> : vector<8x32xf32>
    %53 = vector.multi_reduction <add>, %52, %cst_26 [0] : vector<2x8x32xf32> to vector<8x32xf32>
    %54 = vector.broadcast %6 : vector<1x32xf32> to vector<8x32xf32>
    %55 = arith.addf %53, %54 : vector<8x32xf32>
    %56 = arith.addf %55, %3 : vector<8x32xf32>
    %cst_27 = arith.constant dense<0.000000e+00> : vector<8xf32>
    %57 = vector.multi_reduction <add>, %56, %cst_27 [1] : vector<8x32xf32> to vector<8xf32>
    %58 = vector.shape_cast %57 : vector<8xf32> to vector<8x1xf32>
    %cst_28 = arith.constant 3.200000e+01 : f32
    %59 = vector.broadcast %cst_28 : f32 to vector<8x1xf32>
    %60 = arith.divf %58, %59 : vector<8x1xf32>
    %61 = vector.broadcast %60 : vector<8x1xf32> to vector<8x32xf32>
    %62 = arith.subf %56, %61 : vector<8x32xf32>
    %63 = arith.mulf %62, %62 : vector<8x32xf32>
    %cst_29 = arith.constant dense<0.000000e+00> : vector<8xf32>
    %64 = vector.multi_reduction <add>, %63, %cst_29 [1] : vector<8x32xf32> to vector<8xf32>
    %65 = vector.shape_cast %64 : vector<8xf32> to vector<8x1xf32>
    %cst_30 = arith.constant 3.200000e+01 : f32
    %66 = vector.broadcast %cst_30 : f32 to vector<8x1xf32>
    %67 = arith.divf %65, %66 : vector<8x1xf32>
    %68 = vector.broadcast %60 : vector<8x1xf32> to vector<8x32xf32>
    %69 = arith.subf %56, %68 : vector<8x32xf32>
    %cst_31 = arith.constant 9.99999996E-13 : f32
    %70 = vector.broadcast %cst_31 : f32 to vector<8x1xf32>
    %71 = arith.addf %67, %70 : vector<8x1xf32>
    %72 = math.rsqrt %71 : vector<8x1xf32>
    %73 = vector.broadcast %72 : vector<8x1xf32> to vector<8x32xf32>
    %74 = arith.mulf %69, %73 : vector<8x32xf32>
    %75 = vector.broadcast %7 : vector<1x32xf32> to vector<8x32xf32>
    %76 = arith.mulf %74, %75 : vector<8x32xf32>
    %77 = vector.broadcast %8 : vector<1x32xf32> to vector<8x32xf32>
    %78 = arith.addf %76, %77 : vector<8x32xf32>
    %79 = arith.truncf %78 : vector<8x32xf32> to vector<8x32xbf16>
    %c0_32 = arith.constant 0 : index
    %c0_33 = arith.constant 0 : index
    %c0_34 = arith.constant 0 : index
    %80 = vector.load %arg9[%c0_32, %c0_33, %c0_34] : memref<1x32x64xbf16, #tpu.memory_space<vmem>>, vector<1x32x64xbf16>
    %81 = vector.shape_cast %80 : vector<1x32x64xbf16> to vector<32x64xbf16>
    %cst_35 = arith.constant dense<0.000000e+00> : vector<8x64xf32>
    %82 = tpu.matmul %79, %81, %cst_35 {dimension_numbers = #tpu.dot_dimension_numbers<[1], [0], [0], [1], [0, 0, 1, 1], [], []>} : vector<8x32xbf16>, vector<32x64xbf16>, vector<8x64xf32> -> vector<8x64xf32>
    %83 = vector.broadcast %9 : vector<1x64xf32> to vector<8x64xf32>
    %84 = arith.addf %82, %83 : vector<8x64xf32>
    %cst_36 = arith.constant 5.000000e-01 : f32
    %85 = vector.broadcast %cst_36 : f32 to vector<8x64xf32>
    %86 = arith.mulf %85, %84 : vector<8x64xf32>
    %cst_37 = arith.constant 4.471500e-02 : f32
    %87 = vector.broadcast %cst_37 : f32 to vector<8x64xf32>
    %88 = arith.mulf %87, %84 : vector<8x64xf32>
    %89 = arith.mulf %88, %84 : vector<8x64xf32>
    %90 = arith.mulf %89, %84 : vector<8x64xf32>
    %91 = arith.addf %84, %90 : vector<8x64xf32>
    %cst_38 = arith.constant 0.797884583 : f32
    %92 = vector.broadcast %cst_38 : f32 to vector<8x64xf32>
    %93 = arith.mulf %92, %91 : vector<8x64xf32>
    %94 = math.tanh %93 : vector<8x64xf32>
    %cst_39 = arith.constant 1.000000e+00 : f32
    %95 = vector.broadcast %cst_39 : f32 to vector<8x64xf32>
    %96 = arith.addf %95, %94 : vector<8x64xf32>
    %97 = arith.mulf %86, %96 : vector<8x64xf32>
    %98 = arith.truncf %97 : vector<8x64xf32> to vector<8x64xbf16>
    %c0_40 = arith.constant 0 : index
    %c0_41 = arith.constant 0 : index
    %c0_42 = arith.constant 0 : index
    %99 = vector.load %arg10[%c0_40, %c0_41, %c0_42] : memref<1x64x32xbf16, #tpu.memory_space<vmem>>, vector<1x64x32xbf16>
    %100 = vector.shape_cast %99 : vector<1x64x32xbf16> to vector<64x32xbf16>
    %cst_43 = arith.constant dense<0.000000e+00> : vector<8x32xf32>
    %101 = tpu.matmul %98, %100, %cst_43 {dimension_numbers = #tpu.dot_dimension_numbers<[1], [0], [0], [1], [0, 0, 1, 1], [], []>} : vector<8x64xbf16>, vector<64x32xbf16>, vector<8x32xf32> -> vector<8x32xf32>
    %102 = vector.broadcast %10 : vector<1x32xf32> to vector<8x32xf32>
    %103 = arith.addf %101, %102 : vector<8x32xf32>
    %104 = arith.addf %103, %78 : vector<8x32xf32>
    %cst_44 = arith.constant dense<0.000000e+00> : vector<8xf32>
    %105 = vector.multi_reduction <add>, %104, %cst_44 [1] : vector<8x32xf32> to vector<8xf32>
    %106 = vector.shape_cast %105 : vector<8xf32> to vector<8x1xf32>
    %cst_45 = arith.constant 3.200000e+01 : f32
    %107 = vector.broadcast %cst_45 : f32 to vector<8x1xf32>
    %108 = arith.divf %106, %107 : vector<8x1xf32>
    %109 = vector.broadcast %108 : vector<8x1xf32> to vector<8x32xf32>
    %110 = arith.subf %104, %109 : vector<8x32xf32>
    %111 = arith.mulf %110, %110 : vector<8x32xf32>
    %cst_46 = arith.constant dense<0.000000e+00> : vector<8xf32>
    %112 = vector.multi_reduction <add>, %111, %cst_46 [1] : vector<8x32xf32> to vector<8xf32>
    %113 = vector.shape_cast %112 : vector<8xf32> to vector<8x1xf32>
    %cst_47 = arith.constant 3.200000e+01 : f32
    %114 = vector.broadcast %cst_47 : f32 to vector<8x1xf32>
    %115 = arith.divf %113, %114 : vector<8x1xf32>
    %116 = vector.broadcast %108 : vector<8x1xf32> to vector<8x32xf32>
    %117 = arith.subf %104, %116 : vector<8x32xf32>
    %cst_48 = arith.constant 9.99999996E-13 : f32
    %118 = vector.broadcast %cst_48 : f32 to vector<8x1xf32>
    %119 = arith.addf %115, %118 : vector<8x1xf32>
    %120 = math.rsqrt %119 : vector<8x1xf32>
    %121 = vector.broadcast %120 : vector<8x1xf32> to vector<8x32xf32>
    %122 = arith.mulf %117, %121 : vector<8x32xf32>
    %123 = vector.broadcast %11 : vector<1x32xf32> to vector<8x32xf32>
    %124 = arith.mulf %122, %123 : vector<8x32xf32>
    %125 = vector.broadcast %12 : vector<1x32xf32> to vector<8x32xf32>
    %126 = arith.addf %124, %125 : vector<8x32xf32>
    %c0_49 = arith.constant 0 : index
    %c0_50 = arith.constant 0 : index
    %127 = vector.load %arg17[%c0_49, %c0_50] : memref<8x32xf32, #tpu.memory_space<vmem>>, vector<8x32xf32>
    tpu.vector_store %arg17[%c0_49, %c0_50], %126 {strides = array<i32>} : memref<8x32xf32, #tpu.memory_space<vmem>>, vector<8x32xf32>,
    %c1_i32 = arith.constant 1 : i32
    %128 = arith.cmpi eq, %arg1, %c1_i32 : i32
    %129 = arith.extui %128 : i1 to i32
    %c0_i32_51 = arith.constant 0 : i32
    %130 = arith.cmpi ne, %129, %c0_i32_51 : i32
    scf.if %130 {
      %131 = vector.extract_strided_slice %126 {offsets = [0, 0], sizes = [1, 32], strides = [1, 1]} : vector<8x32xf32> to vector<1x32xf32>
      %132 = arith.truncf %131 : vector<1x32xf32> to vector<1x32xbf16>
      %c0_52 = arith.constant 0 : index
      %c0_53 = arith.constant 0 : index
      %133 = vector.load %arg12[%c0_52, %c0_53] : memref<32x16xbf16, #tpu.memory_space<vmem>>, vector<32x16xbf16>
      %cst_54 = arith.constant dense<0.000000e+00> : vector<1x16xf32>
      %134 = tpu.matmul %132, %133, %cst_54 {dimension_numbers = #tpu.dot_dimension_numbers<[1], [0], [0], [1], [0, 0, 1, 1], [], []>} : vector<1x32xbf16>, vector<32x16xbf16>, vector<1x16xf32> -> vector<1x16xf32>
      %c0_55 = arith.constant 0 : index
      %c0_56 = arith.constant 0 : index
      %135 = vector.load %arg13[%c0_55, %c0_56] : memref<1x16xf32, #tpu.memory_space<vmem>>, vector<1x16xf32>
      %136 = arith.addf %134, %135 : vector<1x16xf32>
      %cst_57 = arith.constant 0.000000e+00 : f32
      %137 = vector.broadcast %cst_57 : f32 to vector<1x16xf32>
      %138 = arith.maximumf %136, %137 : vector<1x16xf32>
      %139 = arith.truncf %138 : vector<1x16xf32> to vector<1x16xbf16>
      %c0_58 = arith.constant 0 : index
      %c0_59 = arith.constant 0 : index
      %140 = vector.load %arg14[%c0_58, %c0_59] : memref<16x4xbf16, #tpu.memory_space<vmem>>, vector<16x4xbf16>
      %cst_60 = arith.constant dense<0.000000e+00> : vector<1x4xf32>
      %141 = tpu.matmul %139, %140, %cst_60 {dimension_numbers = #tpu.dot_dimension_numbers<[1], [0], [0], [1], [0, 0, 1, 1], [], []>} : vector<1x16xbf16>, vector<16x4xbf16>, vector<1x4xf32> -> vector<1x4xf32>
      %c0_61 = arith.constant 0 : index
      %c0_62 = arith.constant 0 : index
      %142 = vector.load %arg15[%c0_61, %c0_62] : memref<1x4xf32, #tpu.memory_space<vmem>>, vector<1x4xf32>
      %143 = arith.addf %141, %142 : vector<1x4xf32>
      %c0_63 = arith.constant 0 : index
      %c0_64 = arith.constant 0 : index
      %c0_65 = arith.constant 0 : index
      %144 = vector.load %arg16[%c0_63, %c0_64, %c0_65] : memref<1x1x4xf32, #tpu.memory_space<vmem>>, vector<1x1x4xf32>
      %145 = vector.shape_cast %144 : vector<1x1x4xf32> to vector<1x4xf32>
      %146 = vector.shape_cast %143 : vector<1x4xf32> to vector<1x1x4xf32>
      tpu.vector_store %arg16[%c0_63, %c0_64, %c0_65], %146 {strides = array<i32>} : memref<1x1x4xf32, #tpu.memory_space<vmem>>, vector<1x1x4xf32>,
    } else {
    }
    return
  }
  func.func @transform_0(%arg0: i32, %arg1: i32) -> (i32, i32, i32) {
    %c0_i32 = arith.constant 0 : i32
    %c0_i32_0 = arith.constant 0 : i32
    %c0_i32_1 = arith.constant 0 : i32
    return %arg0, %c0_i32, %c0_i32_0 : i32, i32, i32
  }
  func.func @transform_1(%arg0: i32, %arg1: i32) -> (i32, i32, i32) {
    %c0_i32 = arith.constant 0 : i32
    %c0_i32_0 = arith.constant 0 : i32
    %c0_i32_1 = arith.constant 0 : i32
    return %arg0, %c0_i32, %c0_i32_0 : i32, i32, i32
  }
  func.func @transform_2(%arg0: i32, %arg1: i32) -> (i32, i32) {
    %c0_i32 = arith.constant 0 : i32
    %c0_i32_0 = arith.constant 0 : i32
    %c0_i32_1 = arith.constant 0 : i32
    return %c0_i32, %c0_i32_0 : i32, i32
  }
  func.func @transform_3(%arg0: i32, %arg1: i32) -> (i32, i32) {
    %c0_i32 = arith.constant 0 : i32
    %c0_i32_0 = arith.constant 0 : i32
    %c0_i32_1 = arith.constant 0 : i32
    return %c0_i32, %c0_i32_0 : i32, i32
  }
  func.func @transform_4(%arg0: i32, %arg1: i32) -> (i32, i32, i32, i32) {
    %c0_i32 = arith.constant 0 : i32
    %c0_i32_0 = arith.constant 0 : i32
    %c0_i32_1 = arith.constant 0 : i32
    %c0_i32_2 = arith.constant 0 : i32
    return %arg1, %c0_i32, %c0_i32_0, %c0_i32_1 : i32, i32, i32, i32
  }
  func.func @transform_5(%arg0: i32, %arg1: i32) -> (i32, i32, i32, i32) {
    %c0_i32 = arith.constant 0 : i32
    %c0_i32_0 = arith.constant 0 : i32
    %c0_i32_1 = arith.constant 0 : i32
    %c0_i32_2 = arith.constant 0 : i32
    return %arg1, %c0_i32, %c0_i32_0, %c0_i32_1 : i32, i32, i32, i32
  }
  func.func @transform_6(%arg0: i32, %arg1: i32) -> (i32, i32, i32, i32) {
    %c0_i32 = arith.constant 0 : i32
    %c0_i32_0 = arith.constant 0 : i32
    %c0_i32_1 = arith.constant 0 : i32
    %c0_i32_2 = arith.constant 0 : i32
    return %arg1, %c0_i32, %c0_i32_0, %c0_i32_1 : i32, i32, i32, i32
  }
  func.func @transform_7(%arg0: i32, %arg1: i32) -> (i32, i32, i32) {
    %c0_i32 = arith.constant 0 : i32
    %c0_i32_0 = arith.constant 0 : i32
    %c0_i32_1 = arith.constant 0 : i32
    return %arg1, %c0_i32, %c0_i32_0 : i32, i32, i32
  }
  func.func @transform_8(%arg0: i32, %arg1: i32) -> (i32, i32, i32) {
    %c0_i32 = arith.constant 0 : i32
    %c0_i32_0 = arith.constant 0 : i32
    %c0_i32_1 = arith.constant 0 : i32
    return %arg1, %c0_i32, %c0_i32_0 : i32, i32, i32
  }
  func.func @transform_9(%arg0: i32, %arg1: i32) -> (i32, i32, i32) {
    %c0_i32 = arith.constant 0 : i32
    %c0_i32_0 = arith.constant 0 : i32
    %c0_i32_1 = arith.constant 0 : i32
    return %arg1, %c0_i32, %c0_i32_0 : i32, i32, i32
  }
  func.func @transform_10(%arg0: i32, %arg1: i32) -> (i32, i32) {
    %c0_i32 = arith.constant 0 : i32
    %c0_i32_0 = arith.constant 0 : i32
    %c0_i32_1 = arith.constant 0 : i32
    return %c0_i32, %c0_i32_0 : i32, i32
  }
  func.func @transform_11(%arg0: i32, %arg1: i32) -> (i32, i32) {
    %c0_i32 = arith.constant 0 : i32
    %c0_i32_0 = arith.constant 0 : i32
    %c0_i32_1 = arith.constant 0 : i32
    return %c0_i32, %c0_i32_0 : i32, i32
  }
  func.func @transform_12(%arg0: i32, %arg1: i32) -> (i32, i32) {
    %c0_i32 = arith.constant 0 : i32
    %c0_i32_0 = arith.constant 0 : i32
    %c0_i32_1 = arith.constant 0 : i32
    return %c0_i32, %c0_i32_0 : i32, i32
  }
  func.func @transform_13(%arg0: i32, %arg1: i32) -> (i32, i32) {
    %c0_i32 = arith.constant 0 : i32
    %c0_i32_0 = arith.constant 0 : i32
    %c0_i32_1 = arith.constant 0 : i32
    return %c0_i32, %c0_i32_0 : i32, i32
  }
  func.func @transform_14(%arg0: i32, %arg1: i32) -> (i32, i32, i32) {
    %c0_i32 = arith.constant 0 : i32
    %c0_i32_0 = arith.constant 0 : i32
    %c0_i32_1 = arith.constant 0 : i32
    return %arg0, %c0_i32, %c0_i32_0 : i32, i32, i32
  }
}

</mosaic_0001>

<llo_original>
// kernel: bert_classifier_forward.1
$region0: #{bert_classifier_forward.1}
  #allocation0 [shape = 'u32[]', space=smem, size = 0x4, offset = 0x4, fixed_abs, tag = 'smem constant byte address 0x4 - core index']
  #allocation1 [shape = 'u32[144,128]{1,0:T(1,128)}', space=vmem, size = 0x12000, scoped, tag = 'internal scratch']
  #allocation2 [shape = 'f32[8,32]{1,0:T(8,128)}', space=vmem, size = 0x1000, scoped, tag = 'scratch operand']
  %s0 = inlined_call_operand.vmem [shape: f32[2,8,32], index: 0, kind: input, shape index: {}]
  %s1 = inlined_call_operand.vmem [shape: f32[2,1,8], index: 1, kind: input, shape index: {}]
  %s2 = inlined_call_operand.vmem [shape: f32[1,32], index: 2, kind: input, shape index: {}]
  %s3 = inlined_call_operand.vmem [shape: f32[1,32], index: 3, kind: input, shape index: {}]
  %s4 = inlined_call_operand.vmem [shape: bf16[2,6,32,16], index: 4, kind: input, shape index: {}]
  %s5 = inlined_call_operand.vmem [shape: f32[2,6,1,16], index: 5, kind: input, shape index: {}]
  %s6 = inlined_call_operand.vmem [shape: bf16[2,2,16,32], index: 6, kind: input, shape index: {}]
  %s7 = inlined_call_operand.vmem [shape: bf16[2,32,64], index: 7, kind: input, shape index: {}]
  %s8 = inlined_call_operand.vmem [shape: bf16[2,64,32], index: 8, kind: input, shape index: {}]
  %s9 = inlined_call_operand.vmem [shape: f32[2,7,64], index: 9, kind: input, shape index: {}]
  %s10 = inlined_call_operand.vmem [shape: bf16[32,16], index: 10, kind: input, shape index: {}]
  %s11 = inlined_call_operand.vmem [shape: f32[1,16], index: 11, kind: input, shape index: {}]
  %s12 = inlined_call_operand.vmem [shape: bf16[16,4], index: 12, kind: input, shape index: {}]
  %s13 = inlined_call_operand.vmem [shape: f32[1,4], index: 13, kind: input, shape index: {}]
  %s14 = inlined_call_operand.hbm [shape: f32[2,1,4], index: 14, kind: output, shape index: {}]
  %s15 = sld [smem:[#allocation0]]
  $region97: #{bert_classifier_forward.1} parent=0
    _
  %s17 = ssub.s32 1, %s15
  %s18 = scalar_select 0, %s17, %s15
  $region1: #{bert_classifier_forward.1} parent=0
    #allocation3 [shape = 'u8[1024]{0}', space=vmem, size = 0x400, scoped, tag = 'output window, operand 0']
    #allocation4 [shape = 's32[2]{0}', space=sflag, size = 0x8, scoped, tag = 'scoped memory for bert_classifier_forward.1']
    %19 = vsyncpa [#allocation4], 0
    %s20 = scalar_lea.sflag [#allocation4], 1
    %21 = vsyncpa %s20, 0
    loop: start=0, step=1, limit=6
    $region2: #{bert_classifier_forward.1} parent=1 // loop_pre_header
      _
    $region3: #{bert_classifier_forward.1} parent=1 // loop_header
      %s23 = sphi 0, %s27
      %p24 = scmp.ge.s32.totalorder %s23, 6
      %s30 = sphi 0, %s42
      %s31 = sphi 0, %s38
      %s32 = sphi 0, %s30
      %s33 = sphi 0, %s31
      %s34 = sphi 0, %s32
      %s35 = sphi 0, %s33
      %s45 = sphi 0, %s47
      %s48 = sphi 0, %s45
      %s49 = sphi 0, %s48
      %s65 = sphi 0, %s49
      %s71 = sphi 0, %s73
      %s74 = sphi 0, %s71
      %s75 = sphi 0, %s74
      %s91 = sphi 0, %s75
      %s95 = sphi 0, %s95
      %s97 = sphi 0, %s95
      %s98 = sphi 0, %s97
      %s112 = sphi 0, %s98
      %s116 = sphi 0, %s116
      %s118 = sphi 0, %s116
      %s119 = sphi 0, %s118
      %s133 = sphi 0, %s119
      %s139 = sphi 0, %s141
      %s142 = sphi 0, %s139
      %s143 = sphi 0, %s142
      %s159 = sphi 0, %s143
      %s165 = sphi 0, %s167
      %s168 = sphi 0, %s165
      %s169 = sphi 0, %s168
      %s185 = sphi 0, %s169
      %s191 = sphi 0, %s193
      %s194 = sphi 0, %s191
      %s195 = sphi 0, %s194
      %s211 = sphi 0, %s195
      %s217 = sphi 0, %s219
      %s220 = sphi 0, %s217
      %s221 = sphi 0, %s220
      %s237 = sphi 0, %s221
      %s243 = sphi 0, %s245
      %s246 = sphi 0, %s243
      %s247 = sphi 0, %s246
      %s263 = sphi 0, %s247
      %s269 = sphi 0, %s271
      %s272 = sphi 0, %s269
      %s273 = sphi 0, %s272
      %s289 = sphi 0, %s273
      %s293 = sphi 0, %s293
      %s295 = sphi 0, %s293
      %s296 = sphi 0, %s295
      %s310 = sphi 0, %s296
      %s314 = sphi 0, %s314
      %s316 = sphi 0, %s314
      %s317 = sphi 0, %s316
      %s331 = sphi 0, %s317
      %s335 = sphi 0, %s335
      %s337 = sphi 0, %s335
      %s338 = sphi 0, %s337
      %s352 = sphi 0, %s338
      %s356 = sphi 0, %s356
      %s358 = sphi 0, %s356
      %s359 = sphi 0, %s358
      %s373 = sphi 0, %s359
      %s379 = sphi 0, %s381
      %s382 = sphi 0, %s379
      %s383 = sphi 0, %s382
      %s399 = sphi 0, %s383
    $region4: #{bert_classifier_forward.1} parent=1 // loop_header_branch
      %26 = sbr.rel (%p24) target = $region8
    $region5: #{bert_classifier_forward.1} parent=1 // loop_body
      %s28 = ssub.s32 %s23, 1
      %s29 = ssub.s32 %s23, 2
      %s36 = sadd.s32 1, %s31
      %p37 = scmp.ge.s32.totalorder %s36, 2
      %s38 = scalar_select %p37, 0, %s36
      %s39 = sadd.s32 1, %s30
      %s40 = scalar_select %p37, %s39, %s30
      %p41 = scmp.ge.s32.totalorder %s40, 2
      %s42 = scalar_select %p41, 0, %s40
      %s43 = ssub.s32 %s30, %s42
      %p44 = scmp.eq.s32.totalorder %s43, 0
      %s46 = sadd.s32 %s45, 1
      %s47 = scalar_select %p44, %s45, %s46
      %p50 = pneg %p44
      %p51 = scmp.eq.s32.totalorder %s23, 3
      %p52 = por %p50, %p51
      %p53 = scmp.ne.s32.totalorder %s45, %s48
      %p54 = scmp.eq.s32.totalorder %s23, 0
      %p55 = por %p53, %p54
      %p56 = scmp.ne.s32.totalorder %s45, %s48
      %p57 = scmp.eq.s32.totalorder %s28, 3
      %p58 = por %p56, %p57
      %p59 = scmp.ne.s32.totalorder %s48, %s49
      %p60 = scmp.eq.s32.totalorder %s28, 0
      %p61 = por %p59, %p60
      %p62 = scmp.ne.s32.totalorder %s48, %s49
      %p63 = scmp.eq.s32.totalorder %s29, 3
      %p64 = por %p62, %p63
      %p66 = scmp.ne.s32.totalorder %s49, %s65
      %p67 = scmp.eq.s32.totalorder %s29, 0
      %p68 = por %p66, %p67
      %s69 = ssub.s32 %s30, %s42
      %p70 = scmp.eq.s32.totalorder %s69, 0
      %s72 = sadd.s32 %s71, 1
      %s73 = scalar_select %p70, %s71, %s72
      %p76 = pneg %p70
      %p77 = scmp.eq.s32.totalorder %s23, 3
      %p78 = por %p76, %p77
      %p79 = scmp.ne.s32.totalorder %s71, %s74
      %p80 = scmp.eq.s32.totalorder %s23, 0
      %p81 = por %p79, %p80
      %p82 = scmp.ne.s32.totalorder %s71, %s74
      %p83 = scmp.eq.s32.totalorder %s28, 3
      %p84 = por %p82, %p83
      %p85 = scmp.ne.s32.totalorder %s74, %s75
      %p86 = scmp.eq.s32.totalorder %s28, 0
      %p87 = por %p85, %p86
      %p88 = scmp.ne.s32.totalorder %s74, %s75
      %p89 = scmp.eq.s32.totalorder %s29, 3
      %p90 = por %p88, %p89
      %p92 = scmp.ne.s32.totalorder %s75, %s91
      %p93 = scmp.eq.s32.totalorder %s29, 0
      %p94 = por %p92, %p93
      %s96 = sadd.s32 %s95, 1
      %p99 = scmp.eq.s32.totalorder %s23, 3
      %p100 = scmp.ne.s32.totalorder %s95, %s97
      %p101 = scmp.eq.s32.totalorder %s23, 0
      %p102 = por %p100, %p101
      %p103 = scmp.ne.s32.totalorder %s95, %s97
      %p104 = scmp.eq.s32.totalorder %s28, 3
      %p105 = por %p103, %p104
      %p106 = scmp.ne.s32.totalorder %s97, %s98
      %p107 = scmp.eq.s32.totalorder %s28, 0
      %p108 = por %p106, %p107
      %p109 = scmp.ne.s32.totalorder %s97, %s98
      %p110 = scmp.eq.s32.totalorder %s29, 3
      %p111 = por %p109, %p110
      %p113 = scmp.ne.s32.totalorder %s98, %s112
      %p114 = scmp.eq.s32.totalorder %s29, 0
      %p115 = por %p113, %p114
      %s117 = sadd.s32 %s116, 1
      %p120 = scmp.eq.s32.totalorder %s23, 3
      %p121 = scmp.ne.s32.totalorder %s116, %s118
      %p122 = scmp.eq.s32.totalorder %s23, 0
      %p123 = por %p121, %p122
      %p124 = scmp.ne.s32.totalorder %s116, %s118
      %p125 = scmp.eq.s32.totalorder %s28, 3
      %p126 = por %p124, %p125
      %p127 = scmp.ne.s32.totalorder %s118, %s119
      %p128 = scmp.eq.s32.totalorder %s28, 0
      %p129 = por %p127, %p128
      %p130 = scmp.ne.s32.totalorder %s118, %s119
      %p131 = scmp.eq.s32.totalorder %s29, 3
      %p132 = por %p130, %p131
      %p134 = scmp.ne.s32.totalorder %s119, %s133
      %p135 = scmp.eq.s32.totalorder %s29, 0
      %p136 = por %p134, %p135
      %s137 = ssub.s32 %s31, %s38
      %p138 = scmp.eq.s32.totalorder %s137, 0
      %s140 = sadd.s32 %s139, 1
      %s141 = scalar_select %p138, %s139, %s140
      %p144 = pneg %p138
      %p145 = scmp.eq.s32.totalorder %s23, 3
      %p146 = por %p144, %p145
      %p147 = scmp.ne.s32.totalorder %s139, %s142
      %p148 = scmp.eq.s32.totalorder %s23, 0
      %p149 = por %p147, %p148
      %p150 = scmp.ne.s32.totalorder %s139, %s142
      %p151 = scmp.eq.s32.totalorder %s28, 3
      %p152 = por %p150, %p151
      %p153 = scmp.ne.s32.totalorder %s142, %s143
      %p154 = scmp.eq.s32.totalorder %s28, 0
      %p155 = por %p153, %p154
      %p156 = scmp.ne.s32.totalorder %s142, %s143
      %p157 = scmp.eq.s32.totalorder %s29, 3
      %p158 = por %p156, %p157
      %p160 = scmp.ne.s32.totalorder %s143, %s159
      %p161 = scmp.eq.s32.totalorder %s29, 0
      %p162 = por %p160, %p161
      %s163 = ssub.s32 %s31, %s38
      %p164 = scmp.eq.s32.totalorder %s163, 0
      %s166 = sadd.s32 %s165, 1
      %s167 = scalar_select %p164, %s165, %s166
      %p170 = pneg %p164
      %p171 = scmp.eq.s32.totalorder %s23, 3
      %p172 = por %p170, %p171
      %p173 = scmp.ne.s32.totalorder %s165, %s168
      %p174 = scmp.eq.s32.totalorder %s23, 0
      %p175 = por %p173, %p174
      %p176 = scmp.ne.s32.totalorder %s165, %s168
      %p177 = scmp.eq.s32.totalorder %s28, 3
      %p178 = por %p176, %p177
      %p179 = scmp.ne.s32.totalorder %s168, %s169
      %p180 = scmp.eq.s32.totalorder %s28, 0
      %p181 = por %p179, %p180
      %p182 = scmp.ne.s32.totalorder %s168, %s169
      %p183 = scmp.eq.s32.totalorder %s29, 3
      %p184 = por %p182, %p183
      %p186 = scmp.ne.s32.totalorder %s169, %s185
      %p187 = scmp.eq.s32.totalorder %s29, 0
      %p188 = por %p186, %p187
      %s189 = ssub.s32 %s31, %s38
      %p190 = scmp.eq.s32.totalorder %s189, 0
      %s192 = sadd.s32 %s191, 1
      %s193 = scalar_select %p190, %s191, %s192
      %p196 = pneg %p190
      %p197 = scmp.eq.s32.totalorder %s23, 3
      %p198 = por %p196, %p197
      %p199 = scmp.ne.s32.totalorder %s191, %s194
      %p200 = scmp.eq.s32.totalorder %s23, 0
      %p201 = por %p199, %p200
      %p202 = scmp.ne.s32.totalorder %s191, %s194
      %p203 = scmp.eq.s32.totalorder %s28, 3
      %p204 = por %p202, %p203
      %p205 = scmp.ne.s32.totalorder %s194, %s195
      %p206 = scmp.eq.s32.totalorder %s28, 0
      %p207 = por %p205, %p206
      %p208 = scmp.ne.s32.totalorder %s194, %s195
      %p209 = scmp.eq.s32.totalorder %s29, 3
      %p210 = por %p208, %p209
      %p212 = scmp.ne.s32.totalorder %s195, %s211
      %p213 = scmp.eq.s32.totalorder %s29, 0
      %p214 = por %p212, %p213
      %s215 = ssub.s32 %s31, %s38
      %p216 = scmp.eq.s32.totalorder %s215, 0
      %s218 = sadd.s32 %s217, 1
      %s219 = scalar_select %p216, %s217, %s218
      %p222 = pneg %p216
      %p223 = scmp.eq.s32.totalorder %s23, 3
      %p224 = por %p222, %p223
      %p225 = scmp.ne.s32.totalorder %s217, %s220
      %p226 = scmp.eq.s32.totalorder %s23, 0
      %p227 = por %p225, %p226
      %p228 = scmp.ne.s32.totalorder %s217, %s220
      %p229 = scmp.eq.s32.totalorder %s28, 3
      %p230 = por %p228, %p229
      %p231 = scmp.ne.s32.totalorder %s220, %s221
      %p232 = scmp.eq.s32.totalorder %s28, 0
      %p233 = por %p231, %p232
      %p234 = scmp.ne.s32.totalorder %s220, %s221
      %p235 = scmp.eq.s32.totalorder %s29, 3
      %p236 = por %p234, %p235
      %p238 = scmp.ne.s32.totalorder %s221, %s237
      %p239 = scmp.eq.s32.totalorder %s29, 0
      %p240 = por %p238, %p239
      %s241 = ssub.s32 %s31, %s38
      %p242 = scmp.eq.s32.totalorder %s241, 0
      %s244 = sadd.s32 %s243, 1
      %s245 = scalar_select %p242, %s243, %s244
      %p248 = pneg %p242
      %p249 = scmp.eq.s32.totalorder %s23, 3
      %p250 = por %p248, %p249
      %p251 = scmp.ne.s32.totalorder %s243, %s246
      %p252 = scmp.eq.s32.totalorder %s23, 0
      %p253 = por %p251, %p252
      %p254 = scmp.ne.s32.totalorder %s243, %s246
      %p255 = scmp.eq.s32.totalorder %s28, 3
      %p256 = por %p254, %p255
      %p257 = scmp.ne.s32.totalorder %s246, %s247
      %p258 = scmp.eq.s32.totalorder %s28, 0
      %p259 = por %p257, %p258
      %p260 = scmp.ne.s32.totalorder %s246, %s247
      %p261 = scmp.eq.s32.totalorder %s29, 3
      %p262 = por %p260, %p261
      %p264 = scmp.ne.s32.totalorder %s247, %s263
      %p265 = scmp.eq.s32.totalorder %s29, 0
      %p266 = por %p264, %p265
      %s267 = ssub.s32 %s31, %s38
      %p268 = scmp.eq.s32.totalorder %s267, 0
      %s270 = sadd.s32 %s269, 1
      %s271 = scalar_select %p268, %s269, %s270
      %p274 = pneg %p268
      %p275 = scmp.eq.s32.totalorder %s23, 3
      %p276 = por %p274, %p275
      %p277 = scmp.ne.s32.totalorder %s269, %s272
      %p278 = scmp.eq.s32.totalorder %s23, 0
      %p279 = por %p277, %p278
      %p280 = scmp.ne.s32.totalorder %s269, %s272
      %p281 = scmp.eq.s32.totalorder %s28, 3
      %p282 = por %p280, %p281
      %p283 = scmp.ne.s32.totalorder %s272, %s273
      %p284 = scmp.eq.s32.totalorder %s28, 0
      %p285 = por %p283, %p284
      %p286 = scmp.ne.s32.totalorder %s272, %s273
      %p287 = scmp.eq.s32.totalorder %s29, 3
      %p288 = por %p286, %p287
      %p290 = scmp.ne.s32.totalorder %s273, %s289
      %p291 = scmp.eq.s32.totalorder %s29, 0
      %p292 = por %p290, %p291
      %s294 = sadd.s32 %s293, 1
      %p297 = scmp.eq.s32.totalorder %s23, 3
      %p298 = scmp.ne.s32.totalorder %s293, %s295
      %p299 = scmp.eq.s32.totalorder %s23, 0
      %p300 = por %p298, %p299
      %p301 = scmp.ne.s32.totalorder %s293, %s295
      %p302 = scmp.eq.s32.totalorder %s28, 3
      %p303 = por %p301, %p302
      %p304 = scmp.ne.s32.totalorder %s295, %s296
      %p305 = scmp.eq.s32.totalorder %s28, 0
      %p306 = por %p304, %p305
      %p307 = scmp.ne.s32.totalorder %s295, %s296
      %p308 = scmp.eq.s32.totalorder %s29, 3
      %p309 = por %p307, %p308
      %p311 = scmp.ne.s32.totalorder %s296, %s310
      %p312 = scmp.eq.s32.totalorder %s29, 0
      %p313 = por %p311, %p312
      %s315 = sadd.s32 %s314, 1
      %p318 = scmp.eq.s32.totalorder %s23, 3
      %p319 = scmp.ne.s32.totalorder %s314, %s316
      %p320 = scmp.eq.s32.totalorder %s23, 0
      %p321 = por %p319, %p320
      %p322 = scmp.ne.s32.totalorder %s314, %s316
      %p323 = scmp.eq.s32.totalorder %s28, 3
      %p324 = por %p322, %p323
      %p325 = scmp.ne.s32.totalorder %s316, %s317
      %p326 = scmp.eq.s32.totalorder %s28, 0
      %p327 = por %p325, %p326
      %p328 = scmp.ne.s32.totalorder %s316, %s317
      %p329 = scmp.eq.s32.totalorder %s29, 3
      %p330 = por %p328, %p329
      %p332 = scmp.ne.s32.totalorder %s317, %s331
      %p333 = scmp.eq.s32.totalorder %s29, 0
      %p334 = por %p332, %p333
      %s336 = sadd.s32 %s335, 1
      %p339 = scmp.eq.s32.totalorder %s23, 3
      %p340 = scmp.ne.s32.totalorder %s335, %s337
      %p341 = scmp.eq.s32.totalorder %s23, 0
      %p342 = por %p340, %p341
      %p343 = scmp.ne.s32.totalorder %s335, %s337
      %p344 = scmp.eq.s32.totalorder %s28, 3
      %p345 = por %p343, %p344
      %p346 = scmp.ne.s32.totalorder %s337, %s338
      %p347 = scmp.eq.s32.totalorder %s28, 0
      %p348 = por %p346, %p347
      %p349 = scmp.ne.s32.totalorder %s337, %s338
      %p350 = scmp.eq.s32.totalorder %s29, 3
      %p351 = por %p349, %p350
      %p353 = scmp.ne.s32.totalorder %s338, %s352
      %p354 = scmp.eq.s32.totalorder %s29, 0
      %p355 = por %p353, %p354
      %s357 = sadd.s32 %s356, 1
      %p360 = scmp.eq.s32.totalorder %s23, 3
      %p361 = scmp.ne.s32.totalorder %s356, %s358
      %p362 = scmp.eq.s32.totalorder %s23, 0
      %p363 = por %p361, %p362
      %p364 = scmp.ne.s32.totalorder %s356, %s358
      %p365 = scmp.eq.s32.totalorder %s28, 3
      %p366 = por %p364, %p365
      %p367 = scmp.ne.s32.totalorder %s358, %s359
      %p368 = scmp.eq.s32.totalorder %s28, 0
      %p369 = por %p367, %p368
      %p370 = scmp.ne.s32.totalorder %s358, %s359
      %p371 = scmp.eq.s32.totalorder %s29, 3
      %p372 = por %p370, %p371
      %p374 = scmp.ne.s32.totalorder %s359, %s373
      %p375 = scmp.eq.s32.totalorder %s29, 0
      %p376 = por %p374, %p375
      %s377 = ssub.s32 %s30, %s42
      %p378 = scmp.eq.s32.totalorder %s377, 0
      %s380 = sadd.s32 %s379, 1
      %s381 = scalar_select %p378, %s379, %s380
      %p384 = pneg %p378
      %p385 = scmp.eq.s32.totalorder %s23, 3
      %p386 = por %p384, %p385
      %p387 = scmp.ne.s32.totalorder %s379, %s382
      %p388 = scmp.eq.s32.totalorder %s23, 0
      %p389 = por %p387, %p388
      %p390 = scmp.ne.s32.totalorder %s379, %s382
      %p391 = scmp.eq.s32.totalorder %s28, 3
      %p392 = por %p390, %p391
      %p393 = scmp.ne.s32.totalorder %s382, %s383
      %p394 = scmp.eq.s32.totalorder %s28, 0
      %p395 = por %p393, %p394
      %p396 = scmp.ne.s32.totalorder %s382, %s383
      %p397 = scmp.eq.s32.totalorder %s29, 3
      %p398 = por %p396, %p397
      %p400 = scmp.ne.s32.totalorder %s383, %s399
      %p401 = scmp.eq.s32.totalorder %s29, 0
      %p402 = por %p400, %p401
      %p403 = scmp.le.s32.totalorder 1, %s23
      %p404 = scmp.lt.s32.totalorder %s23, 5
      %p405 = pnand %p403, %p404
      %p406 = pneg %p405
      // Predicated region
      $region9: #{bert_classifier_forward.1} parent=5 // pred_check
        _
      $region10: #{bert_classifier_forward.1} parent=5 // pred_check_branch
        %408 = sbr.rel (%p405) target = $region12
      $region11: #{bert_classifier_forward.1} parent=5 // pred_region
        %s409 = ssub.s32 %s23, 1
        // Predicated region
        $region13: #{bert_classifier_forward.1} parent=11 // pred_check
          %p410 = pneg %p108
        $region14: #{bert_classifier_forward.1} parent=11 // pred_check_branch
          %412 = sbr.rel (%p410) target = $region16
        $region15: #{bert_classifier_forward.1} parent=11 // pred_region
          _
        $region16: #{bert_classifier_forward.1} parent=11 // pred_fallthru
          _
        // Predicated region
        $region17: #{bert_classifier_forward.1} parent=11 // pred_check
          %p413 = pneg %p129
        $region18: #{bert_classifier_forward.1} parent=11 // pred_check_branch
          %415 = sbr.rel (%p413) target = $region20
        $region19: #{bert_classifier_forward.1} parent=11 // pred_region
          _
        $region20: #{bert_classifier_forward.1} parent=11 // pred_fallthru
          _
        // Predicated region
        $region21: #{bert_classifier_forward.1} parent=11 // pred_check
          %p416 = pneg %p306
        $region22: #{bert_classifier_forward.1} parent=11 // pred_check_branch
          %418 = sbr.rel (%p416) target = $region24
        $region23: #{bert_classifier_forward.1} parent=11 // pred_region
          _
        $region24: #{bert_classifier_forward.1} parent=11 // pred_fallthru
          _
        // Predicated region
        $region25: #{bert_classifier_forward.1} parent=11 // pred_check
          %p419 = pneg %p327
        $region26: #{bert_classifier_forward.1} parent=11 // pred_check_branch
          %421 = sbr.rel (%p419) target = $region28
        $region27: #{bert_classifier_forward.1} parent=11 // pred_region
          _
        $region28: #{bert_classifier_forward.1} parent=11 // pred_fallthru
          _
        // Predicated region
        $region29: #{bert_classifier_forward.1} parent=11 // pred_check
          %p422 = pneg %p348
        $region30: #{bert_classifier_forward.1} parent=11 // pred_check_branch
          %424 = sbr.rel (%p422) target = $region32
        $region31: #{bert_classifier_forward.1} parent=11 // pred_region
          _
        $region32: #{bert_classifier_forward.1} parent=11 // pred_fallthru
          _
        // Predicated region
        $region33: #{bert_classifier_forward.1} parent=11 // pred_check
          %p425 = pneg %p369
        $region34: #{bert_classifier_forward.1} parent=11 // pred_check_branch
          %427 = sbr.rel (%p425) target = $region36
        $region35: #{bert_classifier_forward.1} parent=11 // pred_region
          _
        $region36: #{bert_classifier_forward.1} parent=11 // pred_fallthru
          _
      $region12: #{bert_classifier_forward.1} parent=5 // pred_fallthru
        _
      %p428 = scmp.lt.s32.totalorder %s23, 4
      // Predicated region
      $region37: #{bert_classifier_forward.1} parent=5 // pred_check
        %p429 = pneg %p428
      $region38: #{bert_classifier_forward.1} parent=5 // pred_check_branch
        %431 = sbr.rel (%p429) target = $region40
      $region39: #{bert_classifier_forward.1} parent=5 // pred_region
        // Predicated region
        $region41: #{bert_classifier_forward.1} parent=39 // pred_check
          %p432 = pneg %p55
        $region42: #{bert_classifier_forward.1} parent=39 // pred_check_branch
          %434 = sbr.rel (%p432) target = $region44
        $region43: #{bert_classifier_forward.1} parent=39 // pred_region
          %p435 = scmp.lt.s32.totalorder %s30, 1
          %s436 = scalar_select %p435, %s30, 1
          %s437 = smul.addr %s436, 8
          %s438 = scalar_lea.vmem %s0, %s437
        $region44: #{bert_classifier_forward.1} parent=39 // pred_fallthru
          _
        // Predicated region
        $region45: #{bert_classifier_forward.1} parent=39 // pred_check
          %p439 = pneg %p81
        $region46: #{bert_classifier_forward.1} parent=39 // pred_check_branch
          %441 = sbr.rel (%p439) target = $region48
        $region47: #{bert_classifier_forward.1} parent=39 // pred_region
          %p442 = scmp.lt.s32.totalorder %s30, 1
          %s443 = scalar_select %p442, %s30, 1
          %s444 = scalar_lea.vmem %s1, %s443
        $region48: #{bert_classifier_forward.1} parent=39 // pred_fallthru
          _
        // Predicated region
        $region49: #{bert_classifier_forward.1} parent=39 // pred_check
          %p445 = pneg %p149
        $region50: #{bert_classifier_forward.1} parent=39 // pred_check_branch
          %447 = sbr.rel (%p445) target = $region52
        $region51: #{bert_classifier_forward.1} parent=39 // pred_region
          %p448 = scmp.lt.s32.totalorder %s31, 1
          %s449 = scalar_select %p448, %s31, 1
          %s450 = smul.addr %s449, 24
          %s451 = smul.addr %s450, 4
          %s452 = scalar_lea.vmem %s4, %s451
        $region52: #{bert_classifier_forward.1} parent=39 // pred_fallthru
          _
        // Predicated region
        $region53: #{bert_classifier_forward.1} parent=39 // pred_check
          %p453 = pneg %p175
        $region54: #{bert_classifier_forward.1} parent=39 // pred_check_branch
          %455 = sbr.rel (%p453) target = $region56
        $region55: #{bert_classifier_forward.1} parent=39 // pred_region
          %p456 = scmp.lt.s32.totalorder %s31, 1
          %s457 = scalar_select %p456, %s31, 1
          %s458 = smul.addr %s457, 6
          %s459 = scalar_lea.vmem %s5, %s458
        $region56: #{bert_classifier_forward.1} parent=39 // pred_fallthru
          _
        // Predicated region
        $region57: #{bert_classifier_forward.1} parent=39 // pred_check
          %p460 = pneg %p201
        $region58: #{bert_classifier_forward.1} parent=39 // pred_check_branch
          %462 = sbr.rel (%p460) target = $region60
        $region59: #{bert_classifier_forward.1} parent=39 // pred_region
          %p463 = scmp.lt.s32.totalorder %s31, 1
          %s464 = scalar_select %p463, %s31, 1
          %s465 = smul.addr %s464, 4
          %s466 = smul.addr %s465, 4
          %s467 = scalar_lea.vmem %s6, %s466
        $region60: #{bert_classifier_forward.1} parent=39 // pred_fallthru
          _
        // Predicated region
        $region61: #{bert_classifier_forward.1} parent=39 // pred_check
          %p468 = pneg %p227
        $region62: #{bert_classifier_forward.1} parent=39 // pred_check_branch
          %470 = sbr.rel (%p468) target = $region64
        $region63: #{bert_classifier_forward.1} parent=39 // pred_region
          %p471 = scmp.lt.s32.totalorder %s31, 1
          %s472 = scalar_select %p471, %s31, 1
          %s473 = smul.addr %s472, 4
          %s474 = smul.addr %s473, 4
          %s475 = scalar_lea.vmem %s7, %s474
        $region64: #{bert_classifier_forward.1} parent=39 // pred_fallthru
          _
        // Predicated region
        $region65: #{bert_classifier_forward.1} parent=39 // pred_check
          %p476 = pneg %p253
        $region66: #{bert_classifier_forward.1} parent=39 // pred_check_branch
          %478 = sbr.rel (%p476) target = $region68
        $region67: #{bert_classifier_forward.1} parent=39 // pred_region
          %p479 = scmp.lt.s32.totalorder %s31, 1
          %s480 = scalar_select %p479, %s31, 1
          %s481 = smul.addr %s480, 8
          %s482 = smul.addr %s481, 4
          %s483 = scalar_lea.vmem %s8, %s482
        $region68: #{bert_classifier_forward.1} parent=39 // pred_fallthru
          _
        // Predicated region
        $region69: #{bert_classifier_forward.1} parent=39 // pred_check
          %p484 = pneg %p279
        $region70: #{bert_classifier_forward.1} parent=39 // pred_check_branch
          %486 = sbr.rel (%p484) target = $region72
        $region71: #{bert_classifier_forward.1} parent=39 // pred_region
          %p487 = scmp.lt.s32.totalorder %s31, 1
          %s488 = scalar_select %p487, %s31, 1
          %s489 = smul.addr %s488, 8
          %s490 = scalar_lea.vmem %s9, %s489
        $region72: #{bert_classifier_forward.1} parent=39 // pred_fallthru
          _
      $region40: #{bert_classifier_forward.1} parent=5 // pred_fallthru
        _
      %p491 = scmp.le.s32.totalorder 1, %s23
      %p492 = scmp.lt.s32.totalorder %s23, 5
      %p493 = pnand %p491, %p492
      %p494 = pneg %p493
      // Predicated region
      $region73: #{bert_classifier_forward.1} parent=5 // pred_check
        _
      $region74: #{bert_classifier_forward.1} parent=5 // pred_check_branch
        %496 = sbr.rel (%p493) target = $region76
      $region75: #{bert_classifier_forward.1} parent=5 // pred_region
        %s497 = ssub.s32 %s23, 1
        %p498 = scmp.lt.s32.totalorder %s32, 1
        %s499 = scalar_select %p498, %s32, 1
        %s500 = smul.addr %s499, 8
        %s501 = scalar_lea.vmem %s0, %s500
        %p502 = pneg %p61
        %p503 = pneg %p58
        %p504 = scmp.lt.s32.totalorder %s32, 1
        %s505 = scalar_select %p504, %s32, 1
        %s506 = scalar_lea.vmem %s1, %s505
        %p507 = pneg %p87
        %p508 = pneg %p84
        %p509 = pneg %p108
        %p510 = pneg %p105
        %p511 = pneg %p129
        %p512 = pneg %p126
        %p513 = scmp.lt.s32.totalorder %s33, 1
        %s514 = scalar_select %p513, %s33, 1
        %s515 = smul.addr %s514, 24
        %s516 = smul.addr %s515, 4
        %s517 = scalar_lea.vmem %s4, %s516
        %p518 = pneg %p155
        %p519 = pneg %p152
        %p520 = scmp.lt.s32.totalorder %s33, 1
        %s521 = scalar_select %p520, %s33, 1
        %s522 = smul.addr %s521, 6
        %s523 = scalar_lea.vmem %s5, %s522
        %p524 = pneg %p181
        %p525 = pneg %p178
        %p526 = scmp.lt.s32.totalorder %s33, 1
        %s527 = scalar_select %p526, %s33, 1
        %s528 = smul.addr %s527, 4
        %s529 = smul.addr %s528, 4
        %s530 = scalar_lea.vmem %s6, %s529
        %p531 = pneg %p207
        %p532 = pneg %p204
        %p533 = scmp.lt.s32.totalorder %s33, 1
        %s534 = scalar_select %p533, %s33, 1
        %s535 = smul.addr %s534, 4
        %s536 = smul.addr %s535, 4
        %s537 = scalar_lea.vmem %s7, %s536
        %p538 = pneg %p233
        %p539 = pneg %p230
        %p540 = scmp.lt.s32.totalorder %s33, 1
        %s541 = scalar_select %p540, %s33, 1
        %s542 = smul.addr %s541, 8
        %s543 = smul.addr %s542, 4
        %s544 = scalar_lea.vmem %s8, %s543
        %p545 = pneg %p259
        %p546 = pneg %p256
        %p547 = scmp.lt.s32.totalorder %s33, 1
        %s548 = scalar_select %p547, %s33, 1
        %s549 = smul.addr %s548, 8
        %s550 = scalar_lea.vmem %s9, %s549
        %p551 = pneg %p285
        %p552 = pneg %p282
        %p553 = pneg %p306
        %p554 = pneg %p303
        %p555 = pneg %p327
        %p556 = pneg %p324
        %p557 = pneg %p348
        %p558 = pneg %p345
        %p559 = pneg %p369
        %p560 = pneg %p366
        %p561 = pneg %p395
        %p562 = pneg %p392
        %s563 = sand.u32 %s382, 1
        %s564 = scalar_lea.sflag [#allocation4], %s563
        %s565 = sand.u32 %s382, 1
        %s566 = scalar_lea.vmem [#allocation3], %s565
        %p567 = scmp.lt.s32.totalorder %s32, 1
        %s568 = scalar_select %p567, %s32, 1
        %s569 = smul.addr %s568, 8
        %s570 = scalar_lea.vmem %s0, %s569
        %p571 = scmp.lt.s32.totalorder %s32, 1
        %s572 = scalar_select %p571, %s32, 1
        %s573 = scalar_lea.vmem %s1, %s572
        %p574 = scmp.lt.s32.totalorder %s33, 1
        %s575 = scalar_select %p574, %s33, 1
        %s576 = smul.addr %s575, 24
        %s577 = smul.addr %s576, 4
        %s578 = scalar_lea.vmem %s4, %s577
        %p579 = scmp.lt.s32.totalorder %s33, 1
        %s580 = scalar_select %p579, %s33, 1
        %s581 = smul.addr %s580, 6
        %s582 = scalar_lea.vmem %s5, %s581
        %p583 = scmp.lt.s32.totalorder %s33, 1
        %s584 = scalar_select %p583, %s33, 1
        %s585 = smul.addr %s584, 4
        %s586 = smul.addr %s585, 4
        %s587 = scalar_lea.vmem %s6, %s586
        %p588 = scmp.lt.s32.totalorder %s33, 1
        %s589 = scalar_select %p588, %s33, 1
        %s590 = smul.addr %s589, 4
        %s591 = smul.addr %s590, 4
        %s592 = scalar_lea.vmem %s7, %s591
        %p593 = scmp.lt.s32.totalorder %s33, 1
        %s594 = scalar_select %p593, %s33, 1
        %s595 = smul.addr %s594, 8
        %s596 = smul.addr %s595, 4
        %s597 = scalar_lea.vmem %s8, %s596
        %p598 = scmp.lt.s32.totalorder %s33, 1
        %s599 = scalar_select %p598, %s33, 1
        %s600 = smul.addr %s599, 8
        %s601 = scalar_lea.vmem %s9, %s600
        %p603 = scmp.eq.s32.totalorder %s33, 0
        // Predicated region
        $region77: #{bert_classifier_forward.1} parent=75 // pred_check
          %p604 = pneg %p603
        $region78: #{bert_classifier_forward.1} parent=75 // pred_check_branch
          %606 = sbr.rel (%p604) target = $region80
        $region79: #{bert_classifier_forward.1} parent=75 // pred_region
          %v607 = vld [vmem:[%s570] sm:$0xff]
          %v608 = vld [vmem:[%s2] sm:$0x1]
          %v609 = vld [vmem:[%s3] sm:$0x1]
          %vm610 = vcmask 261120
          %v611 = vsel %vm610, %v607, 0.0
          %612 = vadd.xlane.f32.xlu0 %v611
          %v613 = vpop.xlane.xlu0 %612
          %v614 = vrcp.pop 32.0
          %v615 = vmul.f32 %v613, %v614
          %v616 = vsub.f32 %v607, %v615
          %v617 = vmul.f32 %v616, %v616
          %v618 = vsel %vm610, %v617, 0.0
          %619 = vadd.xlane.f32.xlu0 %v618
          %v620 = vpop.xlane.xlu0 %619
          %v621 = vmul.f32 %v620, %v614
          %v622 = vadd.f32 %v621, 1e-12
          %v623 = vrsqrt.pop %v622
          %v624 = vmul.f32 %v616, %v623
          %v626 = vlaneseq
          %v627 = vshrl.u32 %v626, 7
          %v628 = vsub.s32 0, %v627
          %v629 = vrot.slane %v608, %v628
          %v631 = vmul.f32 %v624, %v629
          %v633 = vlaneseq
          %v634 = vshrl.u32 %v633, 7
          %v635 = vsub.s32 0, %v634
          %v636 = vrot.slane %v609, %v635
          %v638 = vadd.f32 %v631, %v636
          %639 = vst.msk [vmem:[#allocation2] sm:$0xff] %vm610, %v638
        $region80: #{bert_classifier_forward.1} parent=75 // pred_fallthru
          _
        %v640 = vld [vmem:[#allocation2] sm:$0xff]
        %v641 = vld [vmem:[%s601] sm:$0x7f]
        %v642 = vpack.c.bf16 %v640, %v640
        %v643 = vld [vmem:[%s578] sm:$0xf]
        %v644 = vld [vmem:[%s578 + $0x4] sm:$0xf]
        %v645 = vld [vmem:[%s578 + $0x8] sm:$0xf]
        %v646 = vld [vmem:[%s578 + $0xc] sm:$0xf]
        %v647 = vld [vmem:[%s578 + $0x10] sm:$0xf]
        %v648 = vld [vmem:[%s578 + $0x14] sm:$0xf]
        %v649 = vld [vmem:[%s578 + $0x18] sm:$0xf]
        %v650 = vld [vmem:[%s578 + $0x1c] sm:$0xf]
        %v651 = vld [vmem:[%s578 + $0x20] sm:$0xf]
        %v652 = vld [vmem:[%s578 + $0x24] sm:$0xf]
        %v653 = vld [vmem:[%s578 + $0x28] sm:$0xf]
        %v654 = vld [vmem:[%s578 + $0x2c] sm:$0xf]
        %v655 = vld [vmem:[%s578 + $0x30] sm:$0xf]
        %v656 = vld [vmem:[%s578 + $0x34] sm:$0xf]
        %v657 = vld [vmem:[%s578 + $0x38] sm:$0xf]
        %v658 = vld [vmem:[%s578 + $0x3c] sm:$0xf]
        %v659 = vld [vmem:[%s578 + $0x40] sm:$0xf]
        %v660 = vld [vmem:[%s578 + $0x44] sm:$0xf]
        %v661 = vld [vmem:[%s578 + $0x48] sm:$0xf]
        %v662 = vld [vmem:[%s578 + $0x4c] sm:$0xf]
        %v663 = vld [vmem:[%s578 + $0x50] sm:$0xf]
        %v664 = vld [vmem:[%s578 + $0x54] sm:$0xf]
        %v665 = vld [vmem:[%s578 + $0x58] sm:$0xf]
        %v666 = vld [vmem:[%s578 + $0x5c] sm:$0xf]
        %v667 = vld [vmem:[%s582] sm:$0x1]
        %v668 = vld [vmem:[%s582 + $0x1] sm:$0x1]
        %v669 = vld [vmem:[%s582 + $0x2] sm:$0x1]
        %v670 = vld [vmem:[%s582 + $0x3] sm:$0x1]
        %v671 = vld [vmem:[%s582 + $0x4] sm:$0x1]
        %v672 = vld [vmem:[%s582 + $0x5] sm:$0x1]
        %v679 = vlaneseq
        %v680 = vshrl.u32 %v679, 7
        %v681 = vsub.s32 0, %v680
        %v682 = vrot.slane %v667, %v681
        %v683 = vlaneseq
        %v684 = vshrl.u32 %v683, 7
        %v685 = vsub.s32 0, %v684
        %v686 = vrot.slane %v668, %v685
        %v687 = vlaneseq
        %v688 = vshrl.u32 %v687, 7
        %v689 = vsub.s32 0, %v688
        %v690 = vrot.slane %v669, %v689
        %v691 = vlaneseq
        %v692 = vshrl.u32 %v691, 7
        %v693 = vsub.s32 0, %v692
        %v694 = vrot.slane %v670, %v693
        %v695 = vlaneseq
        %v696 = vshrl.u32 %v695, 7
        %v697 = vsub.s32 0, %v696
        %v698 = vrot.slane %v671, %v697
        %v699 = vlaneseq
        %v700 = vshrl.u32 %v699, 7
        %v701 = vsub.s32 0, %v700
        %v702 = vrot.slane %v672, %v701
        %v713 = vunpack.c.l.b16 %v643
        %v714 = vunpack.c.l.b16 %v644
        %v715 = vunpack.c.l.b16 %v645
        %v716 = vunpack.c.l.b16 %v646
        %v717 = vpack.c.b16 %v714, %v713
        %v718 = vpack.c.b16 %v716, %v715
        %vm721 = vcmask 261120
        %v723 = vsel %vm721, %v642, 0
        %725 = vmatprep.subr.bf16.mxu0 0
        %726 = vmatpush1.bf16.msra.mxu0 %v717
        %727 = vmatprep.subr.bf16.mxu0 0
        %728 = vmatpush1.bf16.msra.mxu0 %v718
        %729 = vmatprep.subr.bf16.mxu0 0
        %730 = vmatpush1.bf16.msra.mxu0 0
        %731 = vmatprep.subr.bf16.mxu0 0
        %732 = vmatpush1.bf16.msra.mxu0 0
        %733 = vmatprep.subr.bf16.mxu0 0
        %734 = vmatpush1.bf16.msra.mxu0 0
        %735 = vmatprep.subr.bf16.mxu0 0
        %736 = vmatpush1.bf16.msra.mxu0 0
        %737 = vmatprep.subr.bf16.mxu0 0
        %738 = vmatpush1.bf16.msra.mxu0 0
        %739 = vmatprep.subr.bf16.mxu0 0
        %740 = vmatpush1.bf16.msra.mxu0 0
        %741 = vmatprep.subr.bf16.mxu0 0
        %742 = vmatpush1.bf16.msra.mxu0 0
        %743 = vmatprep.subr.bf16.mxu0 0
        %744 = vmatpush1.bf16.msra.mxu0 0
        %745 = vmatprep.subr.bf16.mxu0 0
        %746 = vmatpush1.bf16.msra.mxu0 0
        %747 = vmatprep.subr.bf16.mxu0 0
        %748 = vmatpush1.bf16.msra.mxu0 0
        %749 = vmatprep.subr.bf16.mxu0 0
        %750 = vmatpush1.bf16.msra.mxu0 0
        %751 = vmatprep.subr.bf16.mxu0 0
        %752 = vmatpush1.bf16.msra.mxu0 0
        %753 = vmatprep.subr.bf16.mxu0 0
        %754 = vmatpush1.bf16.msra.mxu0 0
        %755 = vmatprep.subr.bf16.mxu0 0
        %756 = vmatpush1.bf16.msra.mxu0 0
        %757 = vmatprep.mubr.bf16.mxu0 0
        %758 = vmatmul.mubr.bf16.gmra.mrb[0].mxu0 %v723
        %v759 = vpop.f32.mrb[0].mxu0
        %v760 = vadd.f32 %v682, %v759
        %v761 = vpop.f32.mrb[0].mxu0
        %v762 = vpop.f32.mrb[0].mxu0
        %v763 = vpop.f32.mrb[0].mxu0
        %764 = vdwg.mxu0
        %v769 = vunpack.c.l.b16 %v647
        %v770 = vunpack.c.l.b16 %v648
        %v771 = vunpack.c.l.b16 %v649
        %v772 = vunpack.c.l.b16 %v650
        %v773 = vpack.c.b16 %v770, %v769
        %v774 = vpack.c.b16 %v772, %v771
        %777 = vmatprep.subr.bf16.mxu0 0
        %778 = vmatpush1.bf16.msra.mxu0 %v773
        %779 = vmatprep.subr.bf16.mxu0 0
        %780 = vmatpush1.bf16.msra.mxu0 %v774
        %781 = vmatprep.subr.bf16.mxu0 0
        %782 = vmatpush1.bf16.msra.mxu0 0
        %783 = vmatprep.subr.bf16.mxu0 0
        %784 = vmatpush1.bf16.msra.mxu0 0
        %785 = vmatprep.subr.bf16.mxu0 0
        %786 = vmatpush1.bf16.msra.mxu0 0
        %787 = vmatprep.subr.bf16.mxu0 0
        %788 = vmatpush1.bf16.msra.mxu0 0
        %789 = vmatprep.subr.bf16.mxu0 0
        %790 = vmatpush1.bf16.msra.mxu0 0
        %791 = vmatprep.subr.bf16.mxu0 0
        %792 = vmatpush1.bf16.msra.mxu0 0
        %793 = vmatprep.subr.bf16.mxu0 0
        %794 = vmatpush1.bf16.msra.mxu0 0
        %795 = vmatprep.subr.bf16.mxu0 0
        %796 = vmatpush1.bf16.msra.mxu0 0
        %797 = vmatprep.subr.bf16.mxu0 0
        %798 = vmatpush1.bf16.msra.mxu0 0
        %799 = vmatprep.subr.bf16.mxu0 0
        %800 = vmatpush1.bf16.msra.mxu0 0
        %801 = vmatprep.subr.bf16.mxu0 0
        %802 = vmatpush1.bf16.msra.mxu0 0
        %803 = vmatprep.subr.bf16.mxu0 0
        %804 = vmatpush1.bf16.msra.mxu0 0
        %805 = vmatprep.subr.bf16.mxu0 0
        %806 = vmatpush1.bf16.msra.mxu0 0
        %807 = vmatprep.subr.bf16.mxu0 0
        %808 = vmatpush1.bf16.msra.mxu0 0
        %809 = vmatprep.mubr.bf16.mxu0 0
        %810 = vmatmul.mubr.bf16.gmra.mrb[0].mxu0 %v723
        %v811 = vpop.f32.mrb[0].mxu0
        %v812 = vadd.f32 %v686, %v811
        %v813 = vpop.f32.mrb[0].mxu0
        %v814 = vpop.f32.mrb[0].mxu0
        %v815 = vpop.f32.mrb[0].mxu0
        %816 = vdwg.mxu0
        %v821 = vunpack.c.l.b16 %v651
        %v822 = vunpack.c.l.b16 %v652
        %v823 = vunpack.c.l.b16 %v653
        %v824 = vunpack.c.l.b16 %v654
        %v825 = vpack.c.b16 %v822, %v821
        %v826 = vpack.c.b16 %v824, %v823
        %829 = vmatprep.subr.bf16.mxu0 0
        %830 = vmatpush1.bf16.msra.mxu0 %v825
        %831 = vmatprep.subr.bf16.mxu0 0
        %832 = vmatpush1.bf16.msra.mxu0 %v826
        %833 = vmatprep.subr.bf16.mxu0 0
        %834 = vmatpush1.bf16.msra.mxu0 0
        %835 = vmatprep.subr.bf16.mxu0 0
        %836 = vmatpush1.bf16.msra.mxu0 0
        %837 = vmatprep.subr.bf16.mxu0 0
        %838 = vmatpush1.bf16.msra.mxu0 0
        %839 = vmatprep.subr.bf16.mxu0 0
        %840 = vmatpush1.bf16.msra.mxu0 0
        %841 = vmatprep.subr.bf16.mxu0 0
        %842 = vmatpush1.bf16.msra.mxu0 0
        %843 = vmatprep.subr.bf16.mxu0 0
        %844 = vmatpush1.bf16.msra.mxu0 0
        %845 = vmatprep.subr.bf16.mxu0 0
        %846 = vmatpush1.bf16.msra.mxu0 0
        %847 = vmatprep.subr.bf16.mxu0 0
        %848 = vmatpush1.bf16.msra.mxu0 0
        %849 = vmatprep.subr.bf16.mxu0 0
        %850 = vmatpush1.bf16.msra.mxu0 0
        %851 = vmatprep.subr.bf16.mxu0 0
        %852 = vmatpush1.bf16.msra.mxu0 0
        %853 = vmatprep.subr.bf16.mxu0 0
        %854 = vmatpush1.bf16.msra.mxu0 0
        %855 = vmatprep.subr.bf16.mxu0 0
        %856 = vmatpush1.bf16.msra.mxu0 0
        %857 = vmatprep.subr.bf16.mxu0 0
        %858 = vmatpush1.bf16.msra.mxu0 0
        %859 = vmatprep.subr.bf16.mxu0 0
        %860 = vmatpush1.bf16.msra.mxu0 0
        %861 = vmatprep.mubr.bf16.mxu0 0
        %862 = vmatmul.mubr.bf16.gmra.mrb[0].mxu0 %v723
        %v863 = vpop.f32.mrb[0].mxu0
        %v864 = vadd.f32 %v690, %v863
        %v865 = vpop.f32.mrb[0].mxu0
        %v866 = vpop.f32.mrb[0].mxu0
        %v867 = vpop.f32.mrb[0].mxu0
        %868 = vdwg.mxu0
        %v873 = vunpack.c.l.b16 %v655
        %v874 = vunpack.c.l.b16 %v656
        %v875 = vunpack.c.l.b16 %v657
        %v876 = vunpack.c.l.b16 %v658
        %v877 = vpack.c.b16 %v874, %v873
        %v878 = vpack.c.b16 %v876, %v875
        %881 = vmatprep.subr.bf16.mxu0 0
        %882 = vmatpush1.bf16.msra.mxu0 %v877
        %883 = vmatprep.subr.bf16.mxu0 0
        %884 = vmatpush1.bf16.msra.mxu0 %v878
        %885 = vmatprep.subr.bf16.mxu0 0
        %886 = vmatpush1.bf16.msra.mxu0 0
        %887 = vmatprep.subr.bf16.mxu0 0
        %888 = vmatpush1.bf16.msra.mxu0 0
        %889 = vmatprep.subr.bf16.mxu0 0
        %890 = vmatpush1.bf16.msra.mxu0 0
        %891 = vmatprep.subr.bf16.mxu0 0
        %892 = vmatpush1.bf16.msra.mxu0 0
        %893 = vmatprep.subr.bf16.mxu0 0
        %894 = vmatpush1.bf16.msra.mxu0 0
        %895 = vmatprep.subr.bf16.mxu0 0
        %896 = vmatpush1.bf16.msra.mxu0 0
        %897 = vmatprep.subr.bf16.mxu0 0
        %898 = vmatpush1.bf16.msra.mxu0 0
        %899 = vmatprep.subr.bf16.mxu0 0
        %900 = vmatpush1.bf16.msra.mxu0 0
        %901 = vmatprep.subr.bf16.mxu0 0
        %902 = vmatpush1.bf16.msra.mxu0 0
        %903 = vmatprep.subr.bf16.mxu0 0
        %904 = vmatpush1.bf16.msra.mxu0 0
        %905 = vmatprep.subr.bf16.mxu0 0
        %906 = vmatpush1.bf16.msra.mxu0 0
        %907 = vmatprep.subr.bf16.mxu0 0
        %908 = vmatpush1.bf16.msra.mxu0 0
        %909 = vmatprep.subr.bf16.mxu0 0
        %910 = vmatpush1.bf16.msra.mxu0 0
        %911 = vmatprep.subr.bf16.mxu0 0
        %912 = vmatpush1.bf16.msra.mxu0 0
        %913 = vmatprep.mubr.bf16.mxu0 0
        %914 = vmatmul.mubr.bf16.gmra.mrb[0].mxu0 %v723
        %v915 = vpop.f32.mrb[0].mxu0
        %v916 = vadd.f32 %v694, %v915
        %v917 = vpop.f32.mrb[0].mxu0
        %v918 = vpop.f32.mrb[0].mxu0
        %v919 = vpop.f32.mrb[0].mxu0
        %920 = vdwg.mxu0
        %v925 = vunpack.c.l.b16 %v659
        %v926 = vunpack.c.l.b16 %v660
        %v927 = vunpack.c.l.b16 %v661
        %v928 = vunpack.c.l.b16 %v662
        %v929 = vpack.c.b16 %v926, %v925
        %v930 = vpack.c.b16 %v928, %v927
        %933 = vmatprep.subr.bf16.mxu0 0
        %934 = vmatpush1.bf16.msra.mxu0 %v929
        %935 = vmatprep.subr.bf16.mxu0 0
        %936 = vmatpush1.bf16.msra.mxu0 %v930
        %937 = vmatprep.subr.bf16.mxu0 0
        %938 = vmatpush1.bf16.msra.mxu0 0
        %939 = vmatprep.subr.bf16.mxu0 0
        %940 = vmatpush1.bf16.msra.mxu0 0
        %941 = vmatprep.subr.bf16.mxu0 0
        %942 = vmatpush1.bf16.msra.mxu0 0
        %943 = vmatprep.subr.bf16.mxu0 0
        %944 = vmatpush1.bf16.msra.mxu0 0
        %945 = vmatprep.subr.bf16.mxu0 0
        %946 = vmatpush1.bf16.msra.mxu0 0
        %947 = vmatprep.subr.bf16.mxu0 0
        %948 = vmatpush1.bf16.msra.mxu0 0
        %949 = vmatprep.subr.bf16.mxu0 0
        %950 = vmatpush1.bf16.msra.mxu0 0
        %951 = vmatprep.subr.bf16.mxu0 0
        %952 = vmatpush1.bf16.msra.mxu0 0
        %953 = vmatprep.subr.bf16.mxu0 0
        %954 = vmatpush1.bf16.msra.mxu0 0
        %955 = vmatprep.subr.bf16.mxu0 0
        %956 = vmatpush1.bf16.msra.mxu0 0
        %957 = vmatprep.subr.bf16.mxu0 0
        %958 = vmatpush1.bf16.msra.mxu0 0
        %959 = vmatprep.subr.bf16.mxu0 0
        %960 = vmatpush1.bf16.msra.mxu0 0
        %961 = vmatprep.subr.bf16.mxu0 0
        %962 = vmatpush1.bf16.msra.mxu0 0
        %963 = vmatprep.subr.bf16.mxu0 0
        %964 = vmatpush1.bf16.msra.mxu0 0
        %965 = vmatprep.mubr.bf16.mxu0 0
        %966 = vmatmul.mubr.bf16.gmra.mrb[0].mxu0 %v723
        %v967 = vpop.f32.mrb[0].mxu0
        %v968 = vadd.f32 %v698, %v967
        %v969 = vpop.f32.mrb[0].mxu0
        %v970 = vpop.f32.mrb[0].mxu0
        %v971 = vpop.f32.mrb[0].mxu0
        %972 = vdwg.mxu0
        %v977 = vunpack.c.l.b16 %v663
        %v978 = vunpack.c.l.b16 %v664
        %v979 = vunpack.c.l.b16 %v665
        %v980 = vunpack.c.l.b16 %v666
        %v981 = vpack.c.b16 %v978, %v977
        %v982 = vpack.c.b16 %v980, %v979
        %985 = vmatprep.subr.bf16.mxu0 0
        %986 = vmatpush1.bf16.msra.mxu0 %v981
        %987 = vmatprep.subr.bf16.mxu0 0
        %988 = vmatpush1.bf16.msra.mxu0 %v982
        %989 = vmatprep.subr.bf16.mxu0 0
        %990 = vmatpush1.bf16.msra.mxu0 0
        %991 = vmatprep.subr.bf16.mxu0 0
        %992 = vmatpush1.bf16.msra.mxu0 0
        %993 = vmatprep.subr.bf16.mxu0 0
        %994 = vmatpush1.bf16.msra.mxu0 0
        %995 = vmatprep.subr.bf16.mxu0 0
        %996 = vmatpush1.bf16.msra.mxu0 0
        %997 = vmatprep.subr.bf16.mxu0 0
        %998 = vmatpush1.bf16.msra.mxu0 0
        %999 = vmatprep.subr.bf16.mxu0 0
        %1000 = vmatpush1.bf16.msra.mxu0 0
        %1001 = vmatprep.subr.bf16.mxu0 0
        %1002 = vmatpush1.bf16.msra.mxu0 0
        %1003 = vmatprep.subr.bf16.mxu0 0
        %1004 = vmatpush1.bf16.msra.mxu0 0
        %1005 = vmatprep.subr.bf16.mxu0 0
        %1006 = vmatpush1.bf16.msra.mxu0 0
        %1007 = vmatprep.subr.bf16.mxu0 0
        %1008 = vmatpush1.bf16.msra.mxu0 0
        %1009 = vmatprep.subr.bf16.mxu0 0
        %1010 = vmatpush1.bf16.msra.mxu0 0
        %1011 = vmatprep.subr.bf16.mxu0 0
        %1012 = vmatpush1.bf16.msra.mxu0 0
        %1013 = vmatprep.subr.bf16.mxu0 0
        %1014 = vmatpush1.bf16.msra.mxu0 0
        %1015 = vmatprep.subr.bf16.mxu0 0
        %1016 = vmatpush1.bf16.msra.mxu0 0
        %1017 = vmatprep.mubr.bf16.mxu0 0
        %1018 = vmatmul.mubr.bf16.gmra.mrb[0].mxu0 %v723
        %v1019 = vpop.f32.mrb[0].mxu0
        %v1020 = vadd.f32 %v702, %v1019
        %v1021 = vpop.f32.mrb[0].mxu0
        %v1022 = vpop.f32.mrb[0].mxu0
        %v1023 = vpop.f32.mrb[0].mxu0
        %1024 = vdwg.mxu0
        %v1025 = vpack.c.bf16 %v760, %v760
        %v1026 = vpack.c.bf16 %v812, %v812
        %v1027 = vpack.c.bf16 %v864, %v864
        %v1028 = vpack.c.bf16 %v916, %v916
        %vm1029 = vcmask 130048
        %v1031 = vsel %vm1029, %v1025, 0
        %v1034 = vsel %vm1029, %v1027, 0
        %1036 = vmatprep.subr.bf16.mxu0 0
        %1037 = vmatpush1.bf16.xpose.msra.mxu0 %v1034
        %1038 = vmatprep.subr.bf16.mxu0 0
        %1039 = vmatpush1.bf16.xpose.msra.mxu0 0
        %1040 = vmatprep.subr.bf16.mxu0 0
        %1041 = vmatpush1.bf16.xpose.msra.mxu0 0
        %1042 = vmatprep.subr.bf16.mxu0 0
        %1043 = vmatpush1.bf16.xpose.msra.mxu0 0
        %1044 = vmatprep.subr.bf16.mxu0 0
        %1045 = vmatpush1.bf16.xpose.msra.mxu0 0
        %1046 = vmatprep.subr.bf16.mxu0 0
        %1047 = vmatpush1.bf16.xpose.msra.mxu0 0
        %1048 = vmatprep.subr.bf16.mxu0 0
        %1049 = vmatpush1.bf16.xpose.msra.mxu0 0
        %1050 = vmatprep.subr.bf16.mxu0 0
        %1051 = vmatpush1.bf16.xpose.msra.mxu0 0
        %1052 = vmatprep.subr.bf16.mxu0 0
        %1053 = vmatpush1.bf16.xpose.msra.mxu0 0
        %1054 = vmatprep.subr.bf16.mxu0 0
        %1055 = vmatpush1.bf16.xpose.msra.mxu0 0
        %1056 = vmatprep.subr.bf16.mxu0 0
        %1057 = vmatpush1.bf16.xpose.msra.mxu0 0
        %1058 = vmatprep.subr.bf16.mxu0 0
        %1059 = vmatpush1.bf16.xpose.msra.mxu0 0
        %1060 = vmatprep.subr.bf16.mxu0 0
        %1061 = vmatpush1.bf16.xpose.msra.mxu0 0
        %1062 = vmatprep.subr.bf16.mxu0 0
        %1063 = vmatpush1.bf16.xpose.msra.mxu0 0
        %1064 = vmatprep.subr.bf16.mxu0 0
        %1065 = vmatpush1.bf16.xpose.msra.mxu0 0
        %1066 = vmatprep.subr.bf16.mxu0 0
        %1067 = vmatpush1.bf16.xpose.msra.mxu0 0
        %1068 = vmatprep.mubr.bf16.mxu0 0
        %1069 = vmatmul.mubr.bf16.gmra.mrb[0].mxu0 %v1031
        %v1070 = vpop.f32.mrb[0].mxu0
        %v1071 = vadd.f32 0.0, %v1070
        %v1072 = vpop.f32.mrb[0].mxu0
        %v1073 = vpop.f32.mrb[0].mxu0
        %v1074 = vpop.f32.mrb[0].mxu0
        %1075 = vdwg.mxu0
        %v1077 = vsel %vm1029, %v1026, 0
        %v1080 = vsel %vm1029, %v1028, 0
        %1082 = vmatprep.subr.bf16.mxu0 0
        %1083 = vmatpush1.bf16.xpose.msra.mxu0 %v1080
        %1084 = vmatprep.subr.bf16.mxu0 0
        %1085 = vmatpush1.bf16.xpose.msra.mxu0 0
        %1086 = vmatprep.subr.bf16.mxu0 0
        %1087 = vmatpush1.bf16.xpose.msra.mxu0 0
        %1088 = vmatprep.subr.bf16.mxu0 0
        %1089 = vmatpush1.bf16.xpose.msra.mxu0 0
        %1090 = vmatprep.subr.bf16.mxu0 0
        %1091 = vmatpush1.bf16.xpose.msra.mxu0 0
        %1092 = vmatprep.subr.bf16.mxu0 0
        %1093 = vmatpush1.bf16.xpose.msra.mxu0 0
        %1094 = vmatprep.subr.bf16.mxu0 0
        %1095 = vmatpush1.bf16.xpose.msra.mxu0 0
        %1096 = vmatprep.subr.bf16.mxu0 0
        %1097 = vmatpush1.bf16.xpose.msra.mxu0 0
        %1098 = vmatprep.subr.bf16.mxu0 0
        %1099 = vmatpush1.bf16.xpose.msra.mxu0 0
        %1100 = vmatprep.subr.bf16.mxu0 0
        %1101 = vmatpush1.bf16.xpose.msra.mxu0 0
        %1102 = vmatprep.subr.bf16.mxu0 0
        %1103 = vmatpush1.bf16.xpose.msra.mxu0 0
        %1104 = vmatprep.subr.bf16.mxu0 0
        %1105 = vmatpush1.bf16.xpose.msra.mxu0 0
        %1106 = vmatprep.subr.bf16.mxu0 0
        %1107 = vmatpush1.bf16.xpose.msra.mxu0 0
        %1108 = vmatprep.subr.bf16.mxu0 0
        %1109 = vmatpush1.bf16.xpose.msra.mxu0 0
        %1110 = vmatprep.subr.bf16.mxu0 0
        %1111 = vmatpush1.bf16.xpose.msra.mxu0 0
        %1112 = vmatprep.subr.bf16.mxu0 0
        %1113 = vmatpush1.bf16.xpose.msra.mxu0 0
        %1114 = vmatprep.mubr.bf16.mxu0 0
        %1115 = vmatmul.mubr.bf16.gmra.mrb[0].mxu0 %v1077
        %v1116 = vpop.f32.mrb[0].mxu0
        %v1117 = vadd.f32 0.0, %v1116
        %v1118 = vpop.f32.mrb[0].mxu0
        %v1119 = vpop.f32.mrb[0].mxu0
        %v1120 = vpop.f32.mrb[0].mxu0
        %1121 = vdwg.mxu0
        %v1122 = vmul.f32 %v1071, 0.25
        %v1123 = vmul.f32 %v1117, 0.25
        %v1124 = vld [vmem:[%s573] sm:$0x1]
        %v1126 = vlaneseq
        %v1127 = vshrl.u32 %v1126, 7
        %v1128 = vsub.s32 0, %v1127
        %v1129 = vrot.slane %v1124, %v1128
        %v1131 = vadd.f32 %v1122, %v1129
        %v1132 = vadd.f32 %v1123, %v1129
        %vm1133 = vcmask 64512
        %v1134 = vsel %vm1133, %v1131, -inf
        %1135 = vmax.xlane.f32.xlu0 %v1134
        %v1136 = vpop.xlane.xlu0 %1135
        %v1137 = vsel %vm1133, %v1132, -inf
        %1138 = vmax.xlane.f32.xlu0 %v1137
        %v1139 = vpop.xlane.xlu0 %1138
        %v1140 = vsub.f32 %v1131, %v1136
        %v1141 = vsub.f32 %v1132, %v1139
        %v1142 = vmul.f32 %v1140, 1.442695
        %v1143 = vpow.pop %v1142
        %v1144 = vmul.f32 %v1141, 1.442695
        %v1145 = vpow.pop %v1144
        %v1146 = vsel %vm1133, %v1143, 0.0
        %1147 = vadd.xlane.f32.xlu0 %v1146
        %v1148 = vpop.xlane.xlu0 %1147
        %v1149 = vsel %vm1133, %v1145, 0.0
        %1150 = vadd.xlane.f32.xlu0 %v1149
        %v1151 = vpop.xlane.xlu0 %1150
        %v1152 = vrcp.pop %v1148
        %v1153 = vrcp.pop %v1151
        %v1154 = vmul.f32 %v1143, %v1152
        %v1155 = vmul.f32 %v1145, %v1153
        %v1156 = vpack.c.bf16 %v1154, %v1154
        %v1157 = vpack.c.bf16 %v1155, %v1155
        %v1158 = vpack.c.bf16 %v968, %v968
        %v1159 = vpack.c.bf16 %v1020, %v1020
        %v1161 = vsel %vm1133, %v1156, 0
        %vm1163 = vcmask 1043456
        %v1165 = vsel %vm1163, %v1158, 0
        %1167 = vmatprep.subr.bf16.mxu0 0
        %1168 = vmatpush1.bf16.msra.mxu0 %v1165
        %1169 = vmatprep.subr.bf16.mxu0 0
        %1170 = vmatpush1.bf16.msra.mxu0 0
        %1171 = vmatprep.subr.bf16.mxu0 0
        %1172 = vmatpush1.bf16.msra.mxu0 0
        %1173 = vmatprep.subr.bf16.mxu0 0
        %1174 = vmatpush1.bf16.msra.mxu0 0
        %1175 = vmatprep.subr.bf16.mxu0 0
        %1176 = vmatpush1.bf16.msra.mxu0 0
        %1177 = vmatprep.subr.bf16.mxu0 0
        %1178 = vmatpush1.bf16.msra.mxu0 0
        %1179 = vmatprep.subr.bf16.mxu0 0
        %1180 = vmatpush1.bf16.msra.mxu0 0
        %1181 = vmatprep.subr.bf16.mxu0 0
        %1182 = vmatpush1.bf16.msra.mxu0 0
        %1183 = vmatprep.subr.bf16.mxu0 0
        %1184 = vmatpush1.bf16.msra.mxu0 0
        %1185 = vmatprep.subr.bf16.mxu0 0
        %1186 = vmatpush1.bf16.msra.mxu0 0
        %1187 = vmatprep.subr.bf16.mxu0 0
        %1188 = vmatpush1.bf16.msra.mxu0 0
        %1189 = vmatprep.subr.bf16.mxu0 0
        %1190 = vmatpush1.bf16.msra.mxu0 0
        %1191 = vmatprep.subr.bf16.mxu0 0
        %1192 = vmatpush1.bf16.msra.mxu0 0
        %1193 = vmatprep.subr.bf16.mxu0 0
        %1194 = vmatpush1.bf16.msra.mxu0 0
        %1195 = vmatprep.subr.bf16.mxu0 0
        %1196 = vmatpush1.bf16.msra.mxu0 0
        %1197 = vmatprep.subr.bf16.mxu0 0
        %1198 = vmatpush1.bf16.msra.mxu0 0
        %1199 = vmatprep.mubr.bf16.mxu0 0
        %1200 = vmatmul.mubr.bf16.gmra.mrb[0].mxu0 %v1161
        %v1201 = vpop.f32.mrb[0].mxu0
        %v1202 = vadd.f32 0.0, %v1201
        %v1203 = vpop.f32.mrb[0].mxu0
        %v1204 = vpop.f32.mrb[0].mxu0
        %v1205 = vpop.f32.mrb[0].mxu0
        %1206 = vdwg.mxu0
        %v1208 = vsel %vm1133, %v1157, 0
        %v1211 = vsel %vm1163, %v1159, 0
        %1213 = vmatprep.subr.bf16.mxu0 0
        %1214 = vmatpush1.bf16.msra.mxu0 %v1211
        %1215 = vmatprep.subr.bf16.mxu0 0
        %1216 = vmatpush1.bf16.msra.mxu0 0
        %1217 = vmatprep.subr.bf16.mxu0 0
        %1218 = vmatpush1.bf16.msra.mxu0 0
        %1219 = vmatprep.subr.bf16.mxu0 0
        %1220 = vmatpush1.bf16.msra.mxu0 0
        %1221 = vmatprep.subr.bf16.mxu0 0
        %1222 = vmatpush1.bf16.msra.mxu0 0
        %1223 = vmatprep.subr.bf16.mxu0 0
        %1224 = vmatpush1.bf16.msra.mxu0 0
        %1225 = vmatprep.subr.bf16.mxu0 0
        %1226 = vmatpush1.bf16.msra.mxu0 0
        %1227 = vmatprep.subr.bf16.mxu0 0
        %1228 = vmatpush1.bf16.msra.mxu0 0
        %1229 = vmatprep.subr.bf16.mxu0 0
        %1230 = vmatpush1.bf16.msra.mxu0 0
        %1231 = vmatprep.subr.bf16.mxu0 0
        %1232 = vmatpush1.bf16.msra.mxu0 0
        %1233 = vmatprep.subr.bf16.mxu0 0
        %1234 = vmatpush1.bf16.msra.mxu0 0
        %1235 = vmatprep.subr.bf16.mxu0 0
        %1236 = vmatpush1.bf16.msra.mxu0 0
        %1237 = vmatprep.subr.bf16.mxu0 0
        %1238 = vmatpush1.bf16.msra.mxu0 0
        %1239 = vmatprep.subr.bf16.mxu0 0
        %1240 = vmatpush1.bf16.msra.mxu0 0
        %1241 = vmatprep.subr.bf16.mxu0 0
        %1242 = vmatpush1.bf16.msra.mxu0 0
        %1243 = vmatprep.subr.bf16.mxu0 0
        %1244 = vmatpush1.bf16.msra.mxu0 0
        %1245 = vmatprep.mubr.bf16.mxu0 0
        %1246 = vmatmul.mubr.bf16.gmra.mrb[0].mxu0 %v1208
        %v1247 = vpop.f32.mrb[0].mxu0
        %v1248 = vadd.f32 0.0, %v1247
        %v1249 = vpop.f32.mrb[0].mxu0
        %v1250 = vpop.f32.mrb[0].mxu0
        %v1251 = vpop.f32.mrb[0].mxu0
        %1252 = vdwg.mxu0
        %v1253 = vpack.c.bf16 %v1202, %v1202
        %v1254 = vpack.c.bf16 %v1248, %v1248
        %v1255 = vld [vmem:[%s587] sm:$0xf]
        %v1256 = vld [vmem:[%s587 + $0x4] sm:$0xf]
        %v1257 = vld [vmem:[%s587 + $0x8] sm:$0xf]
        %v1258 = vld [vmem:[%s587 + $0xc] sm:$0xf]
        %v1261 = vunpack.c.l.b16 %v1255
        %v1262 = vunpack.c.l.b16 %v1256
        %v1263 = vpack.c.b16 %v1262, %v1261
        %v1266 = vsel %vm1029, %v1253, 0
        %1268 = vmatprep.subr.bf16.mxu0 0
        %1269 = vmatpush1.bf16.msra.mxu0 %v1263
        %1270 = vmatprep.subr.bf16.mxu0 0
        %1271 = vmatpush1.bf16.msra.mxu0 0
        %1272 = vmatprep.subr.bf16.mxu0 0
        %1273 = vmatpush1.bf16.msra.mxu0 0
        %1274 = vmatprep.subr.bf16.mxu0 0
        %1275 = vmatpush1.bf16.msra.mxu0 0
        %1276 = vmatprep.subr.bf16.mxu0 0
        %1277 = vmatpush1.bf16.msra.mxu0 0
        %1278 = vmatprep.subr.bf16.mxu0 0
        %1279 = vmatpush1.bf16.msra.mxu0 0
        %1280 = vmatprep.subr.bf16.mxu0 0
        %1281 = vmatpush1.bf16.msra.mxu0 0
        %1282 = vmatprep.subr.bf16.mxu0 0
        %1283 = vmatpush1.bf16.msra.mxu0 0
        %1284 = vmatprep.subr.bf16.mxu0 0
        %1285 = vmatpush1.bf16.msra.mxu0 0
        %1286 = vmatprep.subr.bf16.mxu0 0
        %1287 = vmatpush1.bf16.msra.mxu0 0
        %1288 = vmatprep.subr.bf16.mxu0 0
        %1289 = vmatpush1.bf16.msra.mxu0 0
        %1290 = vmatprep.subr.bf16.mxu0 0
        %1291 = vmatpush1.bf16.msra.mxu0 0
        %1292 = vmatprep.subr.bf16.mxu0 0
        %1293 = vmatpush1.bf16.msra.mxu0 0
        %1294 = vmatprep.subr.bf16.mxu0 0
        %1295 = vmatpush1.bf16.msra.mxu0 0
        %1296 = vmatprep.subr.bf16.mxu0 0
        %1297 = vmatpush1.bf16.msra.mxu0 0
        %1298 = vmatprep.subr.bf16.mxu0 0
        %1299 = vmatpush1.bf16.msra.mxu0 0
        %1300 = vmatprep.mubr.bf16.mxu0 0
        %1301 = vmatmul.mubr.bf16.gmra.mrb[0].mxu0 %v1266
        %v1302 = vpop.f32.mrb[0].mxu0
        %v1303 = vadd.f32 0.0, %v1302
        %v1304 = vpop.f32.mrb[0].mxu0
        %v1305 = vpop.f32.mrb[0].mxu0
        %v1306 = vpop.f32.mrb[0].mxu0
        %1307 = vdwg.mxu0
        %v1310 = vunpack.c.l.b16 %v1257
        %v1311 = vunpack.c.l.b16 %v1258
        %v1312 = vpack.c.b16 %v1311, %v1310
        %v1315 = vsel %vm1029, %v1254, 0
        %1317 = vmatprep.subr.bf16.mxu0 0
        %1318 = vmatpush1.bf16.msra.mxu0 %v1312
        %1319 = vmatprep.subr.bf16.mxu0 0
        %1320 = vmatpush1.bf16.msra.mxu0 0
        %1321 = vmatprep.subr.bf16.mxu0 0
        %1322 = vmatpush1.bf16.msra.mxu0 0
        %1323 = vmatprep.subr.bf16.mxu0 0
        %1324 = vmatpush1.bf16.msra.mxu0 0
        %1325 = vmatprep.subr.bf16.mxu0 0
        %1326 = vmatpush1.bf16.msra.mxu0 0
        %1327 = vmatprep.subr.bf16.mxu0 0
        %1328 = vmatpush1.bf16.msra.mxu0 0
        %1329 = vmatprep.subr.bf16.mxu0 0
        %1330 = vmatpush1.bf16.msra.mxu0 0
        %1331 = vmatprep.subr.bf16.mxu0 0
        %1332 = vmatpush1.bf16.msra.mxu0 0
        %1333 = vmatprep.subr.bf16.mxu0 0
        %1334 = vmatpush1.bf16.msra.mxu0 0
        %1335 = vmatprep.subr.bf16.mxu0 0
        %1336 = vmatpush1.bf16.msra.mxu0 0
        %1337 = vmatprep.subr.bf16.mxu0 0
        %1338 = vmatpush1.bf16.msra.mxu0 0
        %1339 = vmatprep.subr.bf16.mxu0 0
        %1340 = vmatpush1.bf16.msra.mxu0 0
        %1341 = vmatprep.subr.bf16.mxu0 0
        %1342 = vmatpush1.bf16.msra.mxu0 0
        %1343 = vmatprep.subr.bf16.mxu0 0
        %1344 = vmatpush1.bf16.msra.mxu0 0
        %1345 = vmatprep.subr.bf16.mxu0 0
        %1346 = vmatpush1.bf16.msra.mxu0 0
        %1347 = vmatprep.subr.bf16.mxu0 0
        %1348 = vmatpush1.bf16.msra.mxu0 0
        %1349 = vmatprep.mubr.bf16.mxu0 0
        %1350 = vmatmul.mubr.bf16.gmra.mrb[0].mxu0 %v1315
        %v1351 = vpop.f32.mrb[0].mxu0
        %v1352 = vadd.f32 0.0, %v1351
        %v1353 = vpop.f32.mrb[0].mxu0
        %v1354 = vpop.f32.mrb[0].mxu0
        %v1355 = vpop.f32.mrb[0].mxu0
        %1356 = vdwg.mxu0
        %v1357 = vsel %vm721, %v1303, 0.0
        %v1358 = vsel %vm721, %v1352, 0.0
        %v1359 = vadd.f32 %v1357, %v1358
        %v1360 = vlaneseq
        %v1361 = vshrl.u32 %v1360, 7
        %v1362 = vsub.s32 0, %v1361
        %v1363 = vrot.slane %v641, %v1362
        %v1364 = vadd.f32 %v1359, %v1363
        %v1365 = vadd.f32 %v1364, %v640
        %v1366 = vsel %vm721, %v1365, 0.0
        %1367 = vadd.xlane.f32.xlu0 %v1366
        %v1368 = vpop.xlane.xlu0 %1367
        %v1369 = vrcp.pop 32.0
        %v1370 = vmul.f32 %v1368, %v1369
        %v1371 = vsub.f32 %v1365, %v1370
        %v1372 = vmul.f32 %v1371, %v1371
        %v1373 = vsel %vm721, %v1372, 0.0
        %1374 = vadd.xlane.f32.xlu0 %v1373
        %v1375 = vpop.xlane.xlu0 %1374
        %v1376 = vmul.f32 %v1375, %v1369
        %v1377 = vadd.f32 %v1376, 1e-12
        %v1378 = vrsqrt.pop %v1377
        %v1379 = vmul.f32 %v1371, %v1378
        %v1380 = vlaneseq
        %v1381 = vshrl.u32 %v1380, 7
        %v1382 = vsub.s32 1, %v1381
        %v1383 = vrot.slane %v641, %v1382
        %v1384 = vmul.f32 %v1379, %v1383
        %v1385 = vlaneseq
        %v1386 = vshrl.u32 %v1385, 7
        %v1387 = vsub.s32 2, %v1386
        %v1388 = vrot.slane %v641, %v1387
        %v1389 = vadd.f32 %v1384, %v1388
        %v1390 = vpack.c.bf16 %v1389, %v1389
        %v1391 = vld [vmem:[%s592] sm:$0xf]
        %v1392 = vld [vmem:[%s592 + $0x4] sm:$0xf]
        %v1393 = vld [vmem:[%s592 + $0x8] sm:$0xf]
        %v1394 = vld [vmem:[%s592 + $0xc] sm:$0xf]
        %v1395 = vlaneseq
        %v1396 = vshrl.u32 %v1395, 7
        %v1397 = vsub.s32 3, %v1396
        %v1398 = vrot.slane %v641, %v1397
        %v1403 = vunpack.c.l.b16 %v1391
        %v1404 = vunpack.c.l.b16 %v1392
        %v1405 = vunpack.c.l.b16 %v1393
        %v1406 = vunpack.c.l.b16 %v1394
        %v1407 = vpack.c.b16 %v1404, %v1403
        %v1408 = vpack.c.b16 %v1406, %v1405
        %v1412 = vsel %vm721, %v1390, 0
        %1414 = vmatprep.subr.bf16.mxu0 0
        %1415 = vmatpush1.bf16.msra.mxu0 %v1407
        %1416 = vmatprep.subr.bf16.mxu0 0
        %1417 = vmatpush1.bf16.msra.mxu0 %v1408
        %1418 = vmatprep.subr.bf16.mxu0 0
        %1419 = vmatpush1.bf16.msra.mxu0 0
        %1420 = vmatprep.subr.bf16.mxu0 0
        %1421 = vmatpush1.bf16.msra.mxu0 0
        %1422 = vmatprep.subr.bf16.mxu0 0
        %1423 = vmatpush1.bf16.msra.mxu0 0
        %1424 = vmatprep.subr.bf16.mxu0 0
        %1425 = vmatpush1.bf16.msra.mxu0 0
        %1426 = vmatprep.subr.bf16.mxu0 0
        %1427 = vmatpush1.bf16.msra.mxu0 0
        %1428 = vmatprep.subr.bf16.mxu0 0
        %1429 = vmatpush1.bf16.msra.mxu0 0
        %1430 = vmatprep.subr.bf16.mxu0 0
        %1431 = vmatpush1.bf16.msra.mxu0 0
        %1432 = vmatprep.subr.bf16.mxu0 0
        %1433 = vmatpush1.bf16.msra.mxu0 0
        %1434 = vmatprep.subr.bf16.mxu0 0
        %1435 = vmatpush1.bf16.msra.mxu0 0
        %1436 = vmatprep.subr.bf16.mxu0 0
        %1437 = vmatpush1.bf16.msra.mxu0 0
        %1438 = vmatprep.subr.bf16.mxu0 0
        %1439 = vmatpush1.bf16.msra.mxu0 0
        %1440 = vmatprep.subr.bf16.mxu0 0
        %1441 = vmatpush1.bf16.msra.mxu0 0
        %1442 = vmatprep.subr.bf16.mxu0 0
        %1443 = vmatpush1.bf16.msra.mxu0 0
        %1444 = vmatprep.subr.bf16.mxu0 0
        %1445 = vmatpush1.bf16.msra.mxu0 0
        %1446 = vmatprep.mubr.bf16.mxu0 0
        %1447 = vmatmul.mubr.bf16.gmra.mrb[0].mxu0 %v1412
        %v1448 = vpop.f32.mrb[0].mxu0
        %v1449 = vadd.f32 %v1398, %v1448
        %v1450 = vpop.f32.mrb[0].mxu0
        %v1451 = vpop.f32.mrb[0].mxu0
        %v1452 = vpop.f32.mrb[0].mxu0
        %1453 = vdwg.mxu0
        %v1454 = vmul.f32 %v1449, 0.5
        %v1455 = vmul.f32 %v1449, 0.044715
        %v1456 = vmul.f32 %v1455, %v1449
        %v1457 = vmul.f32 %v1456, %v1449
        %v1458 = vadd.f32 %v1449, %v1457
        %v1459 = vmul.f32 %v1458, 0.7978846
        %v1460 = vtanh.pop %v1459
        %v1461 = vadd.f32 %v1460, 1.0
        %v1462 = vmul.f32 %v1454, %v1461
        %v1463 = vpack.c.bf16 %v1462, %v1462
        %v1464 = vld [vmem:[%s597] sm:$0xf]
        %v1465 = vld [vmem:[%s597 + $0x4] sm:$0xf]
        %v1466 = vld [vmem:[%s597 + $0x8] sm:$0xf]
        %v1467 = vld [vmem:[%s597 + $0xc] sm:$0xf]
        %v1468 = vld [vmem:[%s597 + $0x10] sm:$0xf]
        %v1469 = vld [vmem:[%s597 + $0x14] sm:$0xf]
        %v1470 = vld [vmem:[%s597 + $0x18] sm:$0xf]
        %v1471 = vld [vmem:[%s597 + $0x1c] sm:$0xf]
        %v1472 = vlaneseq
        %v1473 = vshrl.u32 %v1472, 7
        %v1474 = vsub.s32 4, %v1473
        %v1475 = vrot.slane %v641, %v1474
        %v1484 = vunpack.c.l.b16 %v1464
        %v1485 = vunpack.c.l.b16 %v1465
        %v1486 = vunpack.c.l.b16 %v1466
        %v1487 = vunpack.c.l.b16 %v1467
        %v1488 = vunpack.c.l.b16 %v1468
        %v1489 = vunpack.c.l.b16 %v1469
        %v1490 = vunpack.c.l.b16 %v1470
        %v1491 = vunpack.c.l.b16 %v1471
        %v1492 = vpack.c.b16 %v1485, %v1484
        %v1493 = vpack.c.b16 %v1487, %v1486
        %v1494 = vpack.c.b16 %v1489, %v1488
        %v1495 = vpack.c.b16 %v1491, %v1490
        %vm1500 = vcmask 523264
        %v1502 = vsel %vm1500, %v1463, 0
        %1504 = vmatprep.subr.bf16.mxu0 0
        %1505 = vmatpush1.bf16.msra.mxu0 %v1492
        %1506 = vmatprep.subr.bf16.mxu0 0
        %1507 = vmatpush1.bf16.msra.mxu0 %v1493
        %1508 = vmatprep.subr.bf16.mxu0 0
        %1509 = vmatpush1.bf16.msra.mxu0 %v1494
        %1510 = vmatprep.subr.bf16.mxu0 0
        %1511 = vmatpush1.bf16.msra.mxu0 %v1495
        %1512 = vmatprep.subr.bf16.mxu0 0
        %1513 = vmatpush1.bf16.msra.mxu0 0
        %1514 = vmatprep.subr.bf16.mxu0 0
        %1515 = vmatpush1.bf16.msra.mxu0 0
        %1516 = vmatprep.subr.bf16.mxu0 0
        %1517 = vmatpush1.bf16.msra.mxu0 0
        %1518 = vmatprep.subr.bf16.mxu0 0
        %1519 = vmatpush1.bf16.msra.mxu0 0
        %1520 = vmatprep.subr.bf16.mxu0 0
        %1521 = vmatpush1.bf16.msra.mxu0 0
        %1522 = vmatprep.subr.bf16.mxu0 0
        %1523 = vmatpush1.bf16.msra.mxu0 0
        %1524 = vmatprep.subr.bf16.mxu0 0
        %1525 = vmatpush1.bf16.msra.mxu0 0
        %1526 = vmatprep.subr.bf16.mxu0 0
        %1527 = vmatpush1.bf16.msra.mxu0 0
        %1528 = vmatprep.subr.bf16.mxu0 0
        %1529 = vmatpush1.bf16.msra.mxu0 0
        %1530 = vmatprep.subr.bf16.mxu0 0
        %1531 = vmatpush1.bf16.msra.mxu0 0
        %1532 = vmatprep.subr.bf16.mxu0 0
        %1533 = vmatpush1.bf16.msra.mxu0 0
        %1534 = vmatprep.subr.bf16.mxu0 0
        %1535 = vmatpush1.bf16.msra.mxu0 0
        %1536 = vmatprep.mubr.bf16.mxu0 0
        %1537 = vmatmul.mubr.bf16.gmra.mrb[0].mxu0 %v1502
        %v1538 = vpop.f32.mrb[0].mxu0
        %v1539 = vadd.f32 %v1475, %v1538
        %v1540 = vpop.f32.mrb[0].mxu0
        %v1541 = vpop.f32.mrb[0].mxu0
        %v1542 = vpop.f32.mrb[0].mxu0
        %1543 = vdwg.mxu0
        %v1544 = vadd.f32 %v1539, %v1389
        %v1545 = vsel %vm721, %v1544, 0.0
        %1546 = vadd.xlane.f32.xlu0 %v1545
        %v1547 = vpop.xlane.xlu0 %1546
        %v1548 = vmul.f32 %v1547, %v1369
        %v1549 = vsub.f32 %v1544, %v1548
        %v1550 = vmul.f32 %v1549, %v1549
        %v1551 = vsel %vm721, %v1550, 0.0
        %1552 = vadd.xlane.f32.xlu0 %v1551
        %v1553 = vpop.xlane.xlu0 %1552
        %v1554 = vmul.f32 %v1553, %v1369
        %v1555 = vadd.f32 %v1554, 1e-12
        %v1556 = vrsqrt.pop %v1555
        %v1557 = vmul.f32 %v1549, %v1556
        %v1558 = vlaneseq
        %v1559 = vshrl.u32 %v1558, 7
        %v1560 = vsub.s32 5, %v1559
        %v1561 = vrot.slane %v641, %v1560
        %v1562 = vmul.f32 %v1557, %v1561
        %v1563 = vlaneseq
        %v1564 = vshrl.u32 %v1563, 7
        %v1565 = vsub.s32 6, %v1564
        %v1566 = vrot.slane %v641, %v1565
        %v1567 = vadd.f32 %v1562, %v1566
        %1568 = vst.msk [vmem:[#allocation2] sm:$0xff] %vm721, %v1567
        %p1569 = scmp.eq.s32.totalorder %s33, 1
        // Predicated region
        $region81: #{bert_classifier_forward.1} parent=75 // pred_check
          %p1570 = pneg %p1569
        $region82: #{bert_classifier_forward.1} parent=75 // pred_check_branch
          %1572 = sbr.rel (%p1570) target = $region84
        $region83: #{bert_classifier_forward.1} parent=75 // pred_region
          %v1573 = vpack.c.bf16 %v1567, %v1567
          %v1574 = vld [vmem:[%s10] sm:$0xf]
          %v1575 = vld [vmem:[%s10 + $0x4] sm:$0xf]
          %v1576 = vld [vmem:[%s10 + $0x8] sm:$0xf]
          %v1577 = vld [vmem:[%s10 + $0xc] sm:$0xf]
          %v1578 = vld [vmem:[%s11] sm:$0x1]
          %v1583 = vunpack.c.l.b16 %v1574
          %v1584 = vunpack.c.l.b16 %v1575
          %v1585 = vunpack.c.l.b16 %v1576
          %v1586 = vunpack.c.l.b16 %v1577
          %v1587 = vpack.c.b16 %v1584, %v1583
          %v1588 = vpack.c.b16 %v1586, %v1585
          %v1592 = vsel %vm721, %v1573, 0
          %1594 = vmatprep.subr.bf16.mxu0 0
          %1595 = vmatpush1.bf16.msra.mxu0 %v1587
          %1596 = vmatprep.subr.bf16.mxu0 0
          %1597 = vmatpush1.bf16.msra.mxu0 %v1588
          %1598 = vmatprep.subr.bf16.mxu0 0
          %1599 = vmatpush1.bf16.msra.mxu0 0
          %1600 = vmatprep.subr.bf16.mxu0 0
          %1601 = vmatpush1.bf16.msra.mxu0 0
          %1602 = vmatprep.subr.bf16.mxu0 0
          %1603 = vmatpush1.bf16.msra.mxu0 0
          %1604 = vmatprep.subr.bf16.mxu0 0
          %1605 = vmatpush1.bf16.msra.mxu0 0
          %1606 = vmatprep.subr.bf16.mxu0 0
          %1607 = vmatpush1.bf16.msra.mxu0 0
          %1608 = vmatprep.subr.bf16.mxu0 0
          %1609 = vmatpush1.bf16.msra.mxu0 0
          %1610 = vmatprep.subr.bf16.mxu0 0
          %1611 = vmatpush1.bf16.msra.mxu0 0
          %1612 = vmatprep.subr.bf16.mxu0 0
          %1613 = vmatpush1.bf16.msra.mxu0 0
          %1614 = vmatprep.subr.bf16.mxu0 0
          %1615 = vmatpush1.bf16.msra.mxu0 0
          %1616 = vmatprep.subr.bf16.mxu0 0
          %1617 = vmatpush1.bf16.msra.mxu0 0
          %1618 = vmatprep.subr.bf16.mxu0 0
          %1619 = vmatpush1.bf16.msra.mxu0 0
          %1620 = vmatprep.subr.bf16.mxu0 0
          %1621 = vmatpush1.bf16.msra.mxu0 0
          %1622 = vmatprep.subr.bf16.mxu0 0
          %1623 = vmatpush1.bf16.msra.mxu0 0
          %1624 = vmatprep.subr.bf16.mxu0 0
          %1625 = vmatpush1.bf16.msra.mxu0 0
          %1626 = vmatprep.mubr.bf16.mxu0 0
          %1627 = vmatmul.mubr.bf16.gmra.mrb[0].mxu0 %v1592
          %v1628 = vpop.f32.mrb[0].mxu0
          %v1629 = vadd.f32 %v1578, %v1628
          %v1630 = vpop.f32.mrb[0].mxu0
          %v1631 = vpop.f32.mrb[0].mxu0
          %v1632 = vpop.f32.mrb[0].mxu0
          %1633 = vdwg.mxu0
          %v1634 = vmax.f32 %v1629, 0.0
          %v1635 = vpack.c.bf16 %v1634, %v1634
          %v1636 = vld [vmem:[%s12] sm:$0xf]
          %v1637 = vld [vmem:[%s12 + $0x4] sm:$0xf]
          %v1638 = vld [vmem:[%s13] sm:$0x1]
          %v1641 = vunpack.c.l.b16 %v1636
          %v1642 = vunpack.c.l.b16 %v1637
          %v1643 = vpack.c.b16 %v1642, %v1641
          %v1646 = vsel %vm1029, %v1635, 0
          %1648 = vmatprep.subr.bf16.mxu0 0
          %1649 = vmatpush1.bf16.msra.mxu0 %v1643
          %1650 = vmatprep.subr.bf16.mxu0 0
          %1651 = vmatpush1.bf16.msra.mxu0 0
          %1652 = vmatprep.subr.bf16.mxu0 0
          %1653 = vmatpush1.bf16.msra.mxu0 0
          %1654 = vmatprep.subr.bf16.mxu0 0
          %1655 = vmatpush1.bf16.msra.mxu0 0
          %1656 = vmatprep.subr.bf16.mxu0 0
          %1657 = vmatpush1.bf16.msra.mxu0 0
          %1658 = vmatprep.subr.bf16.mxu0 0
          %1659 = vmatpush1.bf16.msra.mxu0 0
          %1660 = vmatprep.subr.bf16.mxu0 0
          %1661 = vmatpush1.bf16.msra.mxu0 0
          %1662 = vmatprep.subr.bf16.mxu0 0
          %1663 = vmatpush1.bf16.msra.mxu0 0
          %1664 = vmatprep.subr.bf16.mxu0 0
          %1665 = vmatpush1.bf16.msra.mxu0 0
          %1666 = vmatprep.subr.bf16.mxu0 0
          %1667 = vmatpush1.bf16.msra.mxu0 0
          %1668 = vmatprep.subr.bf16.mxu0 0
          %1669 = vmatpush1.bf16.msra.mxu0 0
          %1670 = vmatprep.subr.bf16.mxu0 0
          %1671 = vmatpush1.bf16.msra.mxu0 0
          %1672 = vmatprep.subr.bf16.mxu0 0
          %1673 = vmatpush1.bf16.msra.mxu0 0
          %1674 = vmatprep.subr.bf16.mxu0 0
          %1675 = vmatpush1.bf16.msra.mxu0 0
          %1676 = vmatprep.subr.bf16.mxu0 0
          %1677 = vmatpush1.bf16.msra.mxu0 0
          %1678 = vmatprep.subr.bf16.mxu0 0
          %1679 = vmatpush1.bf16.msra.mxu0 0
          %1680 = vmatprep.mubr.bf16.mxu0 0
          %1681 = vmatmul.mubr.bf16.gmra.mrb[0].mxu0 %v1646
          %v1682 = vpop.f32.mrb[0].mxu0
          %v1683 = vadd.f32 %v1638, %v1682
          %v1684 = vpop.f32.mrb[0].mxu0
          %v1685 = vpop.f32.mrb[0].mxu0
          %v1686 = vpop.f32.mrb[0].mxu0
          %1687 = vdwg.mxu0
          %vm1688 = vcmask 24576
          %1689 = vst.msk [vmem:[%s566] sm:$0x1] %vm1688, %v1683
        $region84: #{bert_classifier_forward.1} parent=75 // pred_fallthru
          _
        %s1690 = sand.u32 %s382, 1
        %s1691 = scalar_lea.sflag [#allocation4], %s1690
        %s1692 = sand.u32 %s382, 1
        %s1693 = scalar_lea.vmem [#allocation3], %s1692
        // Predicated region
        $region85: #{bert_classifier_forward.1} parent=75 // pred_check
          %p1694 = pneg %p392
        $region86: #{bert_classifier_forward.1} parent=75 // pred_check_branch
          %1696 = sbr.rel (%p1694) target = $region88
        $region87: #{bert_classifier_forward.1} parent=75 // pred_region
          %s1698 = ssub.s32 16, 16
          %1699 = vsyncadd %s1691, %s1698
          %s1700 = smul.addr %s32, 16
          %s1701 = scalar_lea.hbm %s14, %s1700
          %s1703 = sshll.u32 %s1693, 4
          %s1704 = int_to_ptr.vmem [resolvable:$true] %s1703
          %1706 = dma.vmem_to_hbm [thread:$0]  %s1704, 16, %s1701, %s1691
        $region88: #{bert_classifier_forward.1} parent=75 // pred_fallthru
          _
      $region76: #{bert_classifier_forward.1} parent=5 // pred_fallthru
        _
      %p1707 = scmp.le.s32.totalorder 2, %s23
      // Predicated region
      $region89: #{bert_classifier_forward.1} parent=5 // pred_check
        %p1708 = pneg %p1707
      $region90: #{bert_classifier_forward.1} parent=5 // pred_check_branch
        %1710 = sbr.rel (%p1708) target = $region92
      $region91: #{bert_classifier_forward.1} parent=5 // pred_region
        %s1711 = ssub.s32 %s23, 2
        // Predicated region
        $region93: #{bert_classifier_forward.1} parent=91 // pred_check
          %p1712 = pneg %p398
        $region94: #{bert_classifier_forward.1} parent=91 // pred_check_branch
          %1714 = sbr.rel (%p1712) target = $region96
        $region95: #{bert_classifier_forward.1} parent=91 // pred_region
          %s1715 = sand.u32 %s383, 1
          %s1716 = scalar_lea.sflag [#allocation4], %s1715
          %s1717 = sand.u32 %s383, 1
          %s1718 = scalar_lea.vmem [#allocation3], %s1717
          %1719 = dma.done %s1716, 16
        $region96: #{bert_classifier_forward.1} parent=91 // pred_fallthru
          _
      $region92: #{bert_classifier_forward.1} parent=5 // pred_fallthru
        _
    $region6: #{bert_classifier_forward.1} parent=1 // loop_footer
      %s27 = sadd.s32 1, %s23
    $region7: #{bert_classifier_forward.1} parent=1 // loop_footer_branch
      %22 = sbr.rel target = $region3
    $region8: #{bert_classifier_forward.1} parent=1 // loop_exit
      _
    %1720 = vsyncpa [#allocation4], 1
    %s1721 = scalar_lea.sflag [#allocation4], 1
    %1722 = vsyncpa %s1721, 1

</llo_original>
